<compile_context>
chip_gen: v6e
topology: v6e:2x2x1
jax: 0.10.0
libtpu: 0.0.40
codegen_flags: <defaults>
</compile_context>

<pallas_src>
import jax
import jax.numpy as jnp
from jax.experimental import pallas as pl
from jax.experimental.pallas import tpu as pltpu

_VMEM_LIMIT = 48 * 1024 * 1024  # raised scoped VMEM; under v7x's 64 MiB physical


def _pick_tile(dim, target):
    """Block size for `dim`: full dim if it fits `target` (full-dim exemption
    from the (8,128) rule), else the largest multiple of 128 <= target that
    divides `dim`, else None (caller falls back to zero-padding, which is exact
    for pos/neg-split affine math since pos(0) = neg(0) = 0)."""
    if dim <= target:
        return dim
    if dim % 128 == 0:
        t = max((min(target, dim) // 128) * 128, 128)
        while dim % t != 0:
            t -= 128
        return t
    return None


# ----------------------------------------------------------------------------
# Kernel 1: fused backsubstitution step
#   ol = pos(CL)@P1 + neg(CL)@P2          (new lower slope)
#   ou = pos(CU)@P2 + neg(CU)@P1          (new upper slope)
#   dl = IL + pos(CL)@a + neg(CL)@b       (new lower intercept)
#   du = IU + pos(CU)@b + neg(CU)@a       (new upper intercept)
# grid = (n_tiles, k_tiles); reduction axis (k) last.
# ----------------------------------------------------------------------------
def _fused_compose_kernel(cl_ref, cu_ref, p1_ref, p2_ref, a_ref, b_ref,
                          il_ref, iu_ref,
                          ol_ref, ou_ref, dl_ref, du_ref):
    n = pl.program_id(0)
    k = pl.program_id(1)

    cl = cl_ref[...]
    cu = cu_ref[...]
    cl_pos = jnp.maximum(cl, 0.0)
    cl_neg = cl - cl_pos            # one vsub instead of a second select
    cu_pos = jnp.maximum(cu, 0.0)
    cu_neg = cu - cu_pos

    @pl.when(k == 0)
    def _():
        ol_ref[...] = jnp.zeros_like(ol_ref)
        ou_ref[...] = jnp.zeros_like(ou_ref)

    ol_ref[...] += (
        jnp.dot(cl_pos, p1_ref[...], preferred_element_type=jnp.float32)
        + jnp.dot(cl_neg, p2_ref[...], preferred_element_type=jnp.float32))
    ou_ref[...] += (
        jnp.dot(cu_pos, p2_ref[...], preferred_element_type=jnp.float32)
        + jnp.dot(cu_neg, p1_ref[...], preferred_element_type=jnp.float32))

    # Intercept update: reuse the resident CL/CU tiles; only on the first
    # output-column tile so each K tile contributes exactly once.
    @pl.when(jnp.logical_and(n == 0, k == 0))
    def _():
        dl_ref[...] = il_ref[...]
        du_ref[...] = iu_ref[...]

    @pl.when(n == 0)
    def _():
        a = a_ref[...]   # (1, tk): broadcast over rows
        b = b_ref[...]
        dl_ref[...] += jnp.sum(cl_pos * a + cl_neg * b, axis=1, keepdims=True)
        du_ref[...] += jnp.sum(cu_pos * b + cu_neg * a, axis=1, keepdims=True)


def fused_compose(cl, cu, p1, p2, a, b, il, iu, *, tk=512, tn=256):
    """One backsubstitution step.  cl, cu: (M, K) current slopes;
    p1, p2: (K, N) previous slopes; a, b: (K,) previous intercepts;
    il, iu: (M,) current intercepts.
    Returns (new_lslope (M,N), new_uslope (M,N), new_lint (M,), new_uint (M,)).
    M is left untiled: DeepPoly constraint counts are modest; tile M as well
    if backsubstituting many thousands of rows on v7x (64 MiB VMEM)."""
    cl = cl.astype(jnp.float32)
    cu = cu.astype(jnp.float32)
    p1 = p1.astype(jnp.float32)
    p2 = p2.astype(jnp.float32)
    a = a.reshape(1, -1).astype(jnp.float32)
    b = b.reshape(1, -1).astype(jnp.float32)
    il = il.reshape(-1, 1).astype(jnp.float32)
    iu = iu.reshape(-1, 1).astype(jnp.float32)
    M, K = cl.shape
    K2, N = p1.shape
    assert cu.shape == (M, K) and K2 == K and p2.shape == (K, N)
    assert a.shape == (1, K) and b.shape == (1, K)
    assert il.shape == (M, 1) and iu.shape == (M, 1)

    tk_ = _pick_tile(K, tk)
    tn_ = _pick_tile(N, tn)
    Kfull, Nfull = K, N
    if tk_ is None:   # exact fallback: zero rows/cols contribute nothing
        Kp = pl.cdiv(K, tk) * tk
        pad_k = Kp - K
        cl = jnp.pad(cl, ((0, 0), (0, pad_k)))
        cu = jnp.pad(cu, ((0, 0), (0, pad_k)))
        p1 = jnp.pad(p1, ((0, pad_k), (0, 0)))
        p2 = jnp.pad(p2, ((0, pad_k), (0, 0)))
        a = jnp.pad(a, ((0, 0), (0, pad_k)))
        b = jnp.pad(b, ((0, 0), (0, pad_k)))
        Kfull, tk_ = Kp, tk
    if tn_ is None:
        Np = pl.cdiv(N, tn) * tn
        p1 = jnp.pad(p1, ((0, 0), (0, Np - N)))
        p2 = jnp.pad(p2, ((0, 0), (0, Np - N)))
        Nfull, tn_ = Np, tn

    grid = (Nfull // tn_, Kfull // tk_)   # (out-col tiles, reduction tiles)

    ol, ou, dl, du = pl.pallas_call(
        _fused_compose_kernel,
        out_shape=(jax.ShapeDtypeStruct((M, Nfull), jnp.float32),
                   jax.ShapeDtypeStruct((M, Nfull), jnp.float32),
                   jax.ShapeDtypeStruct((M, 1), jnp.float32),
                   jax.ShapeDtypeStruct((M, 1), jnp.float32)),
        grid_spec=pltpu.PrefetchScalarGridSpec(
            num_scalar_prefetch=0,
            grid=grid,
            in_specs=[
                pl.BlockSpec((M, tk_), lambda n, k: (0, k)),    # CL tile
                pl.BlockSpec((M, tk_), lambda n, k: (0, k)),    # CU tile
                pl.BlockSpec((tk_, tn_), lambda n, k: (k, n)),  # PL slope tile
                pl.BlockSpec((tk_, tn_), lambda n, k: (k, n)),  # PU slope tile
                pl.BlockSpec((1, tk_), lambda n, k: (0, k)),    # PL intercept
                pl.BlockSpec((1, tk_), lambda n, k: (0, k)),    # PU intercept
                pl.BlockSpec((M, 1), lambda n, k: (0, 0)),      # CL intercept
                pl.BlockSpec((M, 1), lambda n, k: (0, 0)),      # CU intercept
            ],
            out_specs=[
                pl.BlockSpec((M, tn_), lambda n, k: (0, n)),    # new lslope
                pl.BlockSpec((M, tn_), lambda n, k: (0, n)),    # new uslope
                pl.BlockSpec((M, 1), lambda n, k: (0, 0)),      # new lint
                pl.BlockSpec((M, 1), lambda n, k: (0, 0)),      # new uint
            ],
        ),
        compiler_params=pltpu.CompilerParams(
            dimension_semantics=("arbitrary", "arbitrary"),
            vmem_limit_bytes=_VMEM_LIMIT,
        ),
    )(cl, cu, p1, p2, a, b, il, iu)

    if Nfull != N:
        ol = ol[:, :N]
        ou = ou[:, :N]
    return ol, ou, dl[:, 0], du[:, 0]


# ----------------------------------------------------------------------------
# Kernel 2: certifier — fused pair of pos/neg mat-vecs with affine init
#   out_l = IL + pos(CL)@a + neg(CL)@b
#   out_u = IU + pos(CU)@b + neg(CU)@a
# VPU multiply + row reduce (no N=128 padding, no MXU waste).
# ----------------------------------------------------------------------------
def _posneg_mv_affine_kernel(cl_ref, cu_ref, a_ref, b_ref, il_ref, iu_ref,
                             ol_ref, ou_ref):
    k = pl.program_id(0)

    @pl.when(k == 0)
    def _():
        ol_ref[...] = il_ref[...]
        ou_ref[...] = iu_ref[...]

    cl = cl_ref[...]
    cu = cu_ref[...]
    a = a_ref[...]
    b = b_ref[...]
    cl_pos = jnp.maximum(cl, 0.0)
    cl_neg = cl - cl_pos
    cu_pos = jnp.maximum(cu, 0.0)
    cu_neg = cu - cu_pos
    ol_ref[...] += jnp.sum(cl_pos * a + cl_neg * b, axis=1, keepdims=True)
    ou_ref[...] += jnp.sum(cu_pos * b + cu_neg * a, axis=1, keepdims=True)


def posneg_matvec_affine(cl, cu, a, b, il, iu, *, tk=1024):
    """cl, cu: (M, K); a, b: (K,); il, iu: (M,). Returns two (M,) vectors."""
    cl = cl.astype(jnp.float32)
    cu = cu.astype(jnp.float32)
    a = a.reshape(1, -1).astype(jnp.float32)
    b = b.reshape(1, -1).astype(jnp.float32)
    il = il.reshape(-1, 1).astype(jnp.float32)
    iu = iu.reshape(-1, 1).astype(jnp.float32)
    M, K = cl.shape
    assert cu.shape == (M, K) and a.shape == (1, K) and b.shape == (1, K)
    assert il.shape == (M, 1) and iu.shape == (M, 1)

    tk_ = _pick_tile(K, tk)
    if tk_ is None:
        Kp = pl.cdiv(K, tk) * tk
        pad = Kp - K
        cl = jnp.pad(cl, ((0, 0), (0, pad)))
        cu = jnp.pad(cu, ((0, 0), (0, pad)))
        a = jnp.pad(a, ((0, 0), (0, pad)))
        b = jnp.pad(b, ((0, 0), (0, pad)))
        K, tk_ = Kp, tk

    out_l, out_u = pl.pallas_call(
        _posneg_mv_affine_kernel,
        out_shape=(jax.ShapeDtypeStruct((M, 1), jnp.float32),
                   jax.ShapeDtypeStruct((M, 1), jnp.float32)),
        grid_spec=pltpu.PrefetchScalarGridSpec(
            num_scalar_prefetch=0,
            grid=(K // tk_,),
            in_specs=[
                pl.BlockSpec((M, tk_), lambda k: (0, k)),
                pl.BlockSpec((M, tk_), lambda k: (0, k)),
                pl.BlockSpec((1, tk_), lambda k: (0, k)),
                pl.BlockSpec((1, tk_), lambda k: (0, k)),
                pl.BlockSpec((M, 1), lambda k: (0, 0)),
                pl.BlockSpec((M, 1), lambda k: (0, 0)),
            ],
            out_specs=[
                pl.BlockSpec((M, 1), lambda k: (0, 0)),
                pl.BlockSpec((M, 1), lambda k: (0, 0)),
            ],
        ),
        compiler_params=pltpu.CompilerParams(
            dimension_semantics=("arbitrary",),
            vmem_limit_bytes=_VMEM_LIMIT,
        ),
    )(cl, cu, a, b, il, iu)
    return out_l[:, 0], out_u[:, 0]


# ----------------------------------------------------------------------------
# DeepPoly constraint objects (JAX re-implementation of the PyTorch classes)
# ----------------------------------------------------------------------------
class DeepPolyConstraints:
    def __init__(self, lbounds, ubounds):
        self.lbounds = lbounds
        self.ubounds = ubounds
        self.previous = None
        self.transformer = None

    @classmethod
    def constraints_from_eps(cls, inputs, eps, clipper):
        lo, hi = clipper
        return cls(jnp.clip(inputs - eps, lo, hi), jnp.clip(inputs + eps, lo, hi))

    @classmethod
    def constraints_from_transformer(cls, previous, lslope, lintercept, uslope, uintercept):
        self = cls.__new__(cls)
        self.lbounds = None
        self.ubounds = None
        self.previous = previous
        self.transformer = (lslope, lintercept, uslope, uintercept)
        return self

    @classmethod
    def constraints_from_flatten(cls, previous, lbounds, ubounds):
        self = cls.__new__(cls)
        self.lbounds = lbounds
        self.ubounds = ubounds
        self.previous = previous
        self.transformer = 'flatten'
        return self

    def certifier(self, lslope, lintercept, uslope, uintercept, initial_bounds):
        lb0 = initial_bounds.lbounds.reshape(-1)
        ub0 = initial_bounds.ubounds.reshape(-1)
        # lbounds = lb0 @ pos(ls).T + ub0 @ neg(ls).T + li   (and symmetric for ub)
        self.lbounds, self.ubounds = posneg_matvec_affine(
            lslope, uslope, lb0, ub0, lintercept, uintercept)

    def backsubstitution(self):
        if self.lbounds is not None and self.ubounds is not None:
            return
        current = self
        clslope, clintercept, cuslope, cuintercept = current.transformer
        current = current.previous
        while current.transformer is not None:
            if isinstance(current.transformer, str) and current.transformer == 'flatten':
                current = current.previous
                continue
            plslope, plintercept, puslope, puintercept = current.transformer
            # One fused kernel per step: new slopes AND updated intercepts,
            # streaming the current slopes / previous slopes from HBM once.
            clslope, cuslope, clintercept, cuintercept = fused_compose(
                clslope, cuslope, plslope, puslope,
                plintercept, puintercept, clintercept, cuintercept)
            current = current.previous
        self.certifier(clslope, clintercept, cuslope, cuintercept, current)


class DeepPolyFlattenLayer:
    def __init__(self, layer=None, is_first=False):
        self.flatten = layer  # the underlying nn.Flatten is just a reshape
        self.is_first = is_first

    def forward(self, previous):
        previous.backsubstitution()
        lbounds = previous.lbounds.reshape(-1)
        ubounds = previous.ubounds.reshape(-1)
        if self.is_first:
            return DeepPolyConstraints(lbounds, ubounds)
        return DeepPolyConstraints.constraints_from_flatten(previous, lbounds, ubounds)


# ----------------------------------------------------------------------------
# Pure-jnp reference for correctness check (mirrors the PyTorch math exactly)
# ----------------------------------------------------------------------------
def _ref_forward(ls1, li1, us1, ui1, ls2, li2, us2, ui2, lb0, ub0):
    hp = jax.lax.Precision.HIGHEST
    pos = lambda x: jnp.where(x > 0, x, jnp.zeros_like(x))
    neg = lambda x: jnp.where(x < 0, x, jnp.zeros_like(x))
    dot = lambda a, b: jnp.dot(a, b, precision=hp)
    cli = dot(li1, pos(ls2).T) + dot(ui1, neg(ls2).T) + li2
    cui = dot(ui1, pos(us2).T) + dot(li1, neg(us2).T) + ui2
    cls_ = dot(pos(ls2), ls1) + dot(neg(ls2), us1)
    cus = dot(pos(us2), us1) + dot(neg(us2), ls1)
    lb = dot(lb0, pos(cls_).T) + dot(ub0, neg(cls_).T) + cli
    ub = dot(ub0, pos(cus).T) + dot(lb0, neg(cus).T) + cui
    return lb, ub


if __name__ == "__main__":
    key = jax.random.PRNGKey(0)
    ks = jax.random.split(key, 8)

    # layout: NCHW input; bounds flattened in row-major N*C*H*W order.
    B, C, H, W = 2, 4, 16, 16
    n_in = B * C * H * W          # 2048
    h1, h2 = 256, 32
    eps = 0.05

    x = jax.random.uniform(ks[0], (B, C, H, W), jnp.float32)
    base = DeepPolyConstraints.constraints_from_eps(x, eps, (0.0, 1.0))
    # first flatten layer in a DeepPoly network (is_first=True): flat base bounds
    base = DeepPolyFlattenLayer(layer=None, is_first=True).forward(base)

    # Deterministic synthetic affine transformers (e.g. linear + ReLU relaxations).
    ls1 = 0.1 * jax.random.normal(ks[1], (h1, n_in), jnp.float32)
    us1 = ls1 + 0.05 * jnp.abs(jax.random.normal(ks[2], (h1, n_in), jnp.float32))
    li1 = 0.1 * jax.random.normal(ks[3], (h1,), jnp.float32)
    ui1 = li1 + 0.05
    c1 = DeepPolyConstraints.constraints_from_transformer(base, ls1, li1, us1, ui1)

    ls2 = 0.1 * jax.random.normal(ks[4], (h2, h1), jnp.float32)
    us2 = ls2 + 0.05 * jnp.abs(jax.random.normal(ks[5], (h2, h1), jnp.float32))
    li2 = 0.1 * jax.random.normal(ks[6], (h2,), jnp.float32)
    ui2 = li2 + 0.05
    c2 = DeepPolyConstraints.constraints_from_transformer(c1, ls2, li2, us2, ui2)

    # The module under test: a (non-first) flatten layer -> triggers backsubstitution.
    layer = DeepPolyFlattenLayer(layer=None, is_first=False)
    out = layer.forward(c2)
    lb = jax.block_until_ready(out.lbounds)
    ub = jax.block_until_ready(out.ubounds)

    lb_ref, ub_ref = _ref_forward(ls1, li1, us1, ui1, ls2, li2, us2, ui2,
                                  base.lbounds, base.ubounds)
    assert lb.shape == (h2,) and ub.shape == (h2,)
    assert jnp.allclose(lb, lb_ref, rtol=1e-4, atol=1e-3)
    assert jnp.allclose(ub, ub_ref, rtol=1e-4, atol=1e-3)
    assert bool(jnp.all(lb <= ub))
    print("KERNEL_OK")
</pallas_src>

<mosaic_0001>
module attributes {stable_mosaic.version = 11 : i64} {
  func.func @_fused_compose_kernel(%arg0: i32, %arg1: i32, %arg2: memref<32x256xf32, #tpu.memory_space<vmem>>, %arg3: memref<32x256xf32, #tpu.memory_space<vmem>>, %arg4: memref<256x256xf32, #tpu.memory_space<vmem>>, %arg5: memref<256x256xf32, #tpu.memory_space<vmem>>, %arg6: memref<1x256xf32, #tpu.memory_space<vmem>>, %arg7: memref<1x256xf32, #tpu.memory_space<vmem>>, %arg8: memref<32x1xf32, #tpu.memory_space<vmem>>, %arg9: memref<32x1xf32, #tpu.memory_space<vmem>>, %arg10: memref<32x256xf32, #tpu.memory_space<vmem>>, %arg11: memref<32x256xf32, #tpu.memory_space<vmem>>, %arg12: memref<32x1xf32, #tpu.memory_space<vmem>>, %arg13: memref<32x1xf32, #tpu.memory_space<vmem>>) attributes {dimension_semantics = [#tpu.dimension_semantics<arbitrary>, #tpu.dimension_semantics<arbitrary>], iteration_bounds = array<i64: 8, 1>, scalar_prefetch = 0 : i64, scratch_operands = 0 : i64, tpu.core_type = #tpu.core_type<tc>, window_params = [{transform_indices = @transform_0, window_bounds = array<i64: 32, 256>}, {transform_indices = @transform_1, window_bounds = array<i64: 32, 256>}, {transform_indices = @transform_2, window_bounds = array<i64: 256, 256>}, {transform_indices = @transform_3, window_bounds = array<i64: 256, 256>}, {transform_indices = @transform_4, window_bounds = array<i64: 1, 256>}, {transform_indices = @transform_5, window_bounds = array<i64: 1, 256>}, {pipeline_mode = #tpu.pipeline_mode<synchronous>, transform_indices = @transform_6, window_bounds = array<i64: 32, 1>}, {pipeline_mode = #tpu.pipeline_mode<synchronous>, transform_indices = @transform_7, window_bounds = array<i64: 32, 1>}, {transform_indices = @transform_8, window_bounds = array<i64: 32, 256>}, {transform_indices = @transform_9, window_bounds = array<i64: 32, 256>}, {pipeline_mode = #tpu.pipeline_mode<synchronous>, transform_indices = @transform_10, window_bounds = array<i64: 32, 1>}, {pipeline_mode = #tpu.pipeline_mode<synchronous>, transform_indices = @transform_11, window_bounds = array<i64: 32, 1>}]} {
    %c0 = arith.constant 0 : index
    %c0_0 = arith.constant 0 : index
    %0 = vector.load %arg2[%c0, %c0_0] : memref<32x256xf32, #tpu.memory_space<vmem>>, vector<32x256xf32>
    %c0_1 = arith.constant 0 : index
    %c0_2 = arith.constant 0 : index
    %1 = vector.load %arg3[%c0_1, %c0_2] : memref<32x256xf32, #tpu.memory_space<vmem>>, vector<32x256xf32>
    %cst = arith.constant 0.000000e+00 : f32
    %2 = vector.broadcast %cst : f32 to vector<32x256xf32>
    %3 = arith.maximumf %0, %2 : vector<32x256xf32>
    %4 = arith.subf %0, %3 : vector<32x256xf32>
    %cst_3 = arith.constant 0.000000e+00 : f32
    %5 = vector.broadcast %cst_3 : f32 to vector<32x256xf32>
    %6 = arith.maximumf %1, %5 : vector<32x256xf32>
    %7 = arith.subf %1, %6 : vector<32x256xf32>
    %c0_i32 = arith.constant 0 : i32
    %8 = arith.cmpi eq, %arg1, %c0_i32 : i32
    %9 = arith.extui %8 : i1 to i32
    %c0_i32_4 = arith.constant 0 : i32
    %10 = arith.cmpi ne, %9, %c0_i32_4 : i32
    scf.if %10 {
      %cst_30 = arith.constant 0.000000e+00 : f32
      %35 = vector.broadcast %cst_30 : f32 to vector<32x256xf32>
      %c0_31 = arith.constant 0 : index
      %c0_32 = arith.constant 0 : index
      %36 = vector.load %arg10[%c0_31, %c0_32] : memref<32x256xf32, #tpu.memory_space<vmem>>, vector<32x256xf32>
      tpu.vector_store %arg10[%c0_31, %c0_32], %35 {strides = array<i32>} : memref<32x256xf32, #tpu.memory_space<vmem>>, vector<32x256xf32>,
      %cst_33 = arith.constant 0.000000e+00 : f32
      %37 = vector.broadcast %cst_33 : f32 to vector<32x256xf32>
      %c0_34 = arith.constant 0 : index
      %c0_35 = arith.constant 0 : index
      %38 = vector.load %arg11[%c0_34, %c0_35] : memref<32x256xf32, #tpu.memory_space<vmem>>, vector<32x256xf32>
      tpu.vector_store %arg11[%c0_34, %c0_35], %37 {strides = array<i32>} : memref<32x256xf32, #tpu.memory_space<vmem>>, vector<32x256xf32>,
    } else {
    }
    %c0_5 = arith.constant 0 : index
    %c0_6 = arith.constant 0 : index
    %11 = vector.load %arg10[%c0_5, %c0_6] : memref<32x256xf32, #tpu.memory_space<vmem>>, vector<32x256xf32>
    %c0_7 = arith.constant 0 : index
    %c0_8 = arith.constant 0 : index
    %12 = vector.load %arg4[%c0_7, %c0_8] : memref<256x256xf32, #tpu.memory_space<vmem>>, vector<256x256xf32>
    %cst_9 = arith.constant dense<0.000000e+00> : vector<32x256xf32>
    %13 = tpu.matmul %3, %12, %cst_9 {dimension_numbers = #tpu.dot_dimension_numbers<[1], [0], [0], [1], [0, 0, 1, 1], [], []>} : vector<32x256xf32>, vector<256x256xf32>, vector<32x256xf32> -> vector<32x256xf32>
    %c0_10 = arith.constant 0 : index
    %c0_11 = arith.constant 0 : index
    %14 = vector.load %arg5[%c0_10, %c0_11] : memref<256x256xf32, #tpu.memory_space<vmem>>, vector<256x256xf32>
    %cst_12 = arith.constant dense<0.000000e+00> : vector<32x256xf32>
    %15 = tpu.matmul %4, %14, %cst_12 {dimension_numbers = #tpu.dot_dimension_numbers<[1], [0], [0], [1], [0, 0, 1, 1], [], []>} : vector<32x256xf32>, vector<256x256xf32>, vector<32x256xf32> -> vector<32x256xf32>
    %16 = arith.addf %13, %15 : vector<32x256xf32>
    %17 = arith.addf %11, %16 : vector<32x256xf32>
    %c0_13 = arith.constant 0 : index
    %c0_14 = arith.constant 0 : index
    %18 = vector.load %arg10[%c0_13, %c0_14] : memref<32x256xf32, #tpu.memory_space<vmem>>, vector<32x256xf32>
    tpu.vector_store %arg10[%c0_13, %c0_14], %17 {strides = array<i32>} : memref<32x256xf32, #tpu.memory_space<vmem>>, vector<32x256xf32>,
    %c0_15 = arith.constant 0 : index
    %c0_16 = arith.constant 0 : index
    %19 = vector.load %arg11[%c0_15, %c0_16] : memref<32x256xf32, #tpu.memory_space<vmem>>, vector<32x256xf32>
    %c0_17 = arith.constant 0 : index
    %c0_18 = arith.constant 0 : index
    %20 = vector.load %arg5[%c0_17, %c0_18] : memref<256x256xf32, #tpu.memory_space<vmem>>, vector<256x256xf32>
    %cst_19 = arith.constant dense<0.000000e+00> : vector<32x256xf32>
    %21 = tpu.matmul %6, %20, %cst_19 {dimension_numbers = #tpu.dot_dimension_numbers<[1], [0], [0], [1], [0, 0, 1, 1], [], []>} : vector<32x256xf32>, vector<256x256xf32>, vector<32x256xf32> -> vector<32x256xf32>
    %c0_20 = arith.constant 0 : index
    %c0_21 = arith.constant 0 : index
    %22 = vector.load %arg4[%c0_20, %c0_21] : memref<256x256xf32, #tpu.memory_space<vmem>>, vector<256x256xf32>
    %cst_22 = arith.constant dense<0.000000e+00> : vector<32x256xf32>
    %23 = tpu.matmul %7, %22, %cst_22 {dimension_numbers = #tpu.dot_dimension_numbers<[1], [0], [0], [1], [0, 0, 1, 1], [], []>} : vector<32x256xf32>, vector<256x256xf32>, vector<32x256xf32> -> vector<32x256xf32>
    %24 = arith.addf %21, %23 : vector<32x256xf32>
    %25 = arith.addf %19, %24 : vector<32x256xf32>
    %c0_23 = arith.constant 0 : index
    %c0_24 = arith.constant 0 : index
    %26 = vector.load %arg11[%c0_23, %c0_24] : memref<32x256xf32, #tpu.memory_space<vmem>>, vector<32x256xf32>
    tpu.vector_store %arg11[%c0_23, %c0_24], %25 {strides = array<i32>} : memref<32x256xf32, #tpu.memory_space<vmem>>, vector<32x256xf32>,
    %c0_i32_25 = arith.constant 0 : i32
    %27 = arith.cmpi eq, %arg0, %c0_i32_25 : i32
    %c0_i32_26 = arith.constant 0 : i32
    %28 = arith.cmpi eq, %arg1, %c0_i32_26 : i32
    %29 = arith.andi %27, %28 : i1
    %30 = arith.extui %29 : i1 to i32
    %c0_i32_27 = arith.constant 0 : i32
    %31 = arith.cmpi ne, %30, %c0_i32_27 : i32
    scf.if %31 {
      %c0_30 = arith.constant 0 : index
      %c0_31 = arith.constant 0 : index
      %35 = vector.load %arg8[%c0_30, %c0_31] : memref<32x1xf32, #tpu.memory_space<vmem>>, vector<32x1xf32>
      %c0_32 = arith.constant 0 : index
      %c0_33 = arith.constant 0 : index
      %36 = vector.load %arg12[%c0_32, %c0_33] : memref<32x1xf32, #tpu.memory_space<vmem>>, vector<32x1xf32>
      tpu.vector_store %arg12[%c0_32, %c0_33], %35 {strides = array<i32>} : memref<32x1xf32, #tpu.memory_space<vmem>>, vector<32x1xf32>,
      %c0_34 = arith.constant 0 : index
      %c0_35 = arith.constant 0 : index
      %37 = vector.load %arg9[%c0_34, %c0_35] : memref<32x1xf32, #tpu.memory_space<vmem>>, vector<32x1xf32>
      %c0_36 = arith.constant 0 : index
      %c0_37 = arith.constant 0 : index
      %38 = vector.load %arg13[%c0_36, %c0_37] : memref<32x1xf32, #tpu.memory_space<vmem>>, vector<32x1xf32>
      tpu.vector_store %arg13[%c0_36, %c0_37], %37 {strides = array<i32>} : memref<32x1xf32, #tpu.memory_space<vmem>>, vector<32x1xf32>,
    } else {
    }
    %c0_i32_28 = arith.constant 0 : i32
    %32 = arith.cmpi eq, %arg0, %c0_i32_28 : i32
    %33 = arith.extui %32 : i1 to i32
    %c0_i32_29 = arith.constant 0 : i32
    %34 = arith.cmpi ne, %33, %c0_i32_29 : i32
    scf.if %34 {
      %c0_30 = arith.constant 0 : index
      %c0_31 = arith.constant 0 : index
      %35 = vector.load %arg6[%c0_30, %c0_31] : memref<1x256xf32, #tpu.memory_space<vmem>>, vector<1x256xf32>
      %c0_32 = arith.constant 0 : index
      %c0_33 = arith.constant 0 : index
      %36 = vector.load %arg7[%c0_32, %c0_33] : memref<1x256xf32, #tpu.memory_space<vmem>>, vector<1x256xf32>
      %c0_34 = arith.constant 0 : index
      %c0_35 = arith.constant 0 : index
      %37 = vector.load %arg12[%c0_34, %c0_35] : memref<32x1xf32, #tpu.memory_space<vmem>>, vector<32x1xf32>
      %38 = vector.broadcast %35 : vector<1x256xf32> to vector<32x256xf32>
      %39 = arith.mulf %3, %38 : vector<32x256xf32>
      %40 = vector.broadcast %36 : vector<1x256xf32> to vector<32x256xf32>
      %41 = arith.mulf %4, %40 : vector<32x256xf32>
      %42 = arith.addf %39, %41 : vector<32x256xf32>
      %cst_36 = arith.constant dense<0.000000e+00> : vector<32xf32>
      %43 = vector.multi_reduction <add>, %42, %cst_36 [1] : vector<32x256xf32> to vector<32xf32>
      %44 = vector.shape_cast %43 : vector<32xf32> to vector<32x1xf32>
      %45 = arith.addf %37, %44 : vector<32x1xf32>
      %c0_37 = arith.constant 0 : index
      %c0_38 = arith.constant 0 : index
      %46 = vector.load %arg12[%c0_37, %c0_38] : memref<32x1xf32, #tpu.memory_space<vmem>>, vector<32x1xf32>
      tpu.vector_store %arg12[%c0_37, %c0_38], %45 {strides = array<i32>} : memref<32x1xf32, #tpu.memory_space<vmem>>, vector<32x1xf32>,
      %c0_39 = arith.constant 0 : index
      %c0_40 = arith.constant 0 : index
      %47 = vector.load %arg13[%c0_39, %c0_40] : memref<32x1xf32, #tpu.memory_space<vmem>>, vector<32x1xf32>
      %48 = vector.broadcast %36 : vector<1x256xf32> to vector<32x256xf32>
      %49 = arith.mulf %6, %48 : vector<32x256xf32>
      %50 = vector.broadcast %35 : vector<1x256xf32> to vector<32x256xf32>
      %51 = arith.mulf %7, %50 : vector<32x256xf32>
      %52 = arith.addf %49, %51 : vector<32x256xf32>
      %cst_41 = arith.constant dense<0.000000e+00> : vector<32xf32>
      %53 = vector.multi_reduction <add>, %52, %cst_41 [1] : vector<32x256xf32> to vector<32xf32>
      %54 = vector.shape_cast %53 : vector<32xf32> to vector<32x1xf32>
      %55 = arith.addf %47, %54 : vector<32x1xf32>
      %c0_42 = arith.constant 0 : index
      %c0_43 = arith.constant 0 : index
      %56 = vector.load %arg13[%c0_42, %c0_43] : memref<32x1xf32, #tpu.memory_space<vmem>>, vector<32x1xf32>
      tpu.vector_store %arg13[%c0_42, %c0_43], %55 {strides = array<i32>} : memref<32x1xf32, #tpu.memory_space<vmem>>, vector<32x1xf32>,
    } else {
    }
    return
  }
  func.func @transform_0(%arg0: i32, %arg1: i32) -> (i32, i32) {
    %c0_i32 = arith.constant 0 : i32
    %c0_i32_0 = arith.constant 0 : i32
    return %c0_i32, %arg1 : i32, i32
  }
  func.func @transform_1(%arg0: i32, %arg1: i32) -> (i32, i32) {
    %c0_i32 = arith.constant 0 : i32
    %c0_i32_0 = arith.constant 0 : i32
    return %c0_i32, %arg1 : i32, i32
  }
  func.func @transform_2(%arg0: i32, %arg1: i32) -> (i32, i32) {
    %c0_i32 = arith.constant 0 : i32
    return %arg1, %arg0 : i32, i32
  }
  func.func @transform_3(%arg0: i32, %arg1: i32) -> (i32, i32) {
    %c0_i32 = arith.constant 0 : i32
    return %arg1, %arg0 : i32, i32
  }
  func.func @transform_4(%arg0: i32, %arg1: i32) -> (i32, i32) {
    %c0_i32 = arith.constant 0 : i32
    %c0_i32_0 = arith.constant 0 : i32
    return %c0_i32, %arg1 : i32, i32
  }
  func.func @transform_5(%arg0: i32, %arg1: i32) -> (i32, i32) {
    %c0_i32 = arith.constant 0 : i32
    %c0_i32_0 = arith.constant 0 : i32
    return %c0_i32, %arg1 : i32, i32
  }
  func.func @transform_6(%arg0: i32, %arg1: i32) -> (i32, i32) {
    %c0_i32 = arith.constant 0 : i32
    %c0_i32_0 = arith.constant 0 : i32
    %c0_i32_1 = arith.constant 0 : i32
    return %c0_i32, %c0_i32_0 : i32, i32
  }
  func.func @transform_7(%arg0: i32, %arg1: i32) -> (i32, i32) {
    %c0_i32 = arith.constant 0 : i32
    %c0_i32_0 = arith.constant 0 : i32
    %c0_i32_1 = arith.constant 0 : i32
    return %c0_i32, %c0_i32_0 : i32, i32
  }
  func.func @transform_8(%arg0: i32, %arg1: i32) -> (i32, i32) {
    %c0_i32 = arith.constant 0 : i32
    %c0_i32_0 = arith.constant 0 : i32
    return %c0_i32, %arg0 : i32, i32
  }
  func.func @transform_9(%arg0: i32, %arg1: i32) -> (i32, i32) {
    %c0_i32 = arith.constant 0 : i32
    %c0_i32_0 = arith.constant 0 : i32
    return %c0_i32, %arg0 : i32, i32
  }
  func.func @transform_10(%arg0: i32, %arg1: i32) -> (i32, i32) {
    %c0_i32 = arith.constant 0 : i32
    %c0_i32_0 = arith.constant 0 : i32
    %c0_i32_1 = arith.constant 0 : i32
    return %c0_i32, %c0_i32_0 : i32, i32
  }
  func.func @transform_11(%arg0: i32, %arg1: i32) -> (i32, i32) {
    %c0_i32 = arith.constant 0 : i32
    %c0_i32_0 = arith.constant 0 : i32
    %c0_i32_1 = arith.constant 0 : i32
    return %c0_i32, %c0_i32_0 : i32, i32
  }
}

</mosaic_0001>

<llo_original>
// kernel: tpu_custom_call.1
$region0: #{tpu_custom_call.1}
  #allocation0 [shape = 'u32[]', space=smem, size = 0x4, offset = 0x4, fixed_abs, tag = 'smem constant byte address 0x4 - core index']
  #allocation1 [shape = 'u32[144,128]{1,0:T(1,128)}', space=vmem, size = 0x12000, scoped, tag = 'internal scratch']
  %s0 = inlined_call_operand.hbm [shape: f32[32,256], index: 0, kind: input, shape index: {}]
  %s1 = inlined_call_operand.hbm [shape: f32[32,256], index: 1, kind: input, shape index: {}]
  %s2 = inlined_call_operand.hbm [shape: f32[256,2048], index: 2, kind: input, shape index: {}]
  %s3 = inlined_call_operand.hbm [shape: f32[256,2048], index: 3, kind: input, shape index: {}]
  %s4 = inlined_call_operand.hbm [shape: f32[1,256], index: 4, kind: input, shape index: {}]
  %s5 = inlined_call_operand.hbm [shape: f32[1,256], index: 5, kind: input, shape index: {}]
  %s6 = inlined_call_operand.vmem [shape: f32[32,1], index: 6, kind: input, shape index: {}]
  %s7 = inlined_call_operand.vmem [shape: f32[32,1], index: 7, kind: input, shape index: {}]
  %s8 = inlined_call_operand.hbm [shape: f32[32,2048], index: 8, kind: output, shape index: {0}]
  %s9 = inlined_call_operand.hbm [shape: f32[32,2048], index: 9, kind: output, shape index: {1}]
  %s10 = inlined_call_operand.vmem [shape: f32[32,1], index: 10, kind: output, shape index: {2}]
  %s11 = inlined_call_operand.vmem [shape: f32[32,1], index: 11, kind: output, shape index: {3}]
  %12 = xla_tuple %s8, %s9, %s10, %s11
  %s13 = sld [smem:[#allocation0]]
  $region125: #{tpu_custom_call.1} parent=0
    _
  %s15 = ssub.s32 1, %s13
  %s16 = scalar_select 0, %s15, %s13
  $region1: #{tpu_custom_call.1} parent=0
    #allocation2 [shape = 'u8[32768]{0}', space=vmem, size = 0x8000, scoped, tag = 'input window, operand 0, single buffered']
    #allocation3 [shape = 's32[2]{0}', space=sflag, size = 0x8, scoped, tag = 'scoped memory for tpu_custom_call.1']
    #allocation4 [shape = 's32[2]{0}', space=sflag, size = 0x8, scoped, tag = 'scoped memory for tpu_custom_call.1']
    #allocation5 [shape = 'u8[32768]{0}', space=vmem, size = 0x8000, scoped, tag = 'input window, operand 1, single buffered']
    #allocation6 [shape = 's32[1]{0}', space=sflag, size = 0x4, scoped, tag = 'scoped memory for tpu_custom_call.1']
    #allocation7 [shape = 'u8[524288]{0}', space=vmem, size = 0x80000, scoped, tag = 'input window, operand 2']
    #allocation8 [shape = 'u8[524288]{0}', space=vmem, size = 0x80000, scoped, tag = 'input window, operand 3']
    #allocation9 [shape = 'u8[1024]{0}', space=vmem, size = 0x400, scoped, tag = 'input window, operand 4, single buffered']
    #allocation10 [shape = 'u8[1024]{0}', space=vmem, size = 0x400, scoped, tag = 'input window, operand 5, single buffered']
    #allocation11 [shape = 's32[1]{0}', space=sflag, size = 0x4, scoped, tag = 'scoped memory for tpu_custom_call.1']
    #allocation12 [shape = 'u8[65536]{0}', space=vmem, size = 0x10000, scoped, tag = 'output window, operand 0']
    #allocation13 [shape = 'u8[65536]{0}', space=vmem, size = 0x10000, scoped, tag = 'output window, operand 1']
    #allocation14 [shape = 's32[2]{0}', space=sflag, size = 0x8, scoped, tag = 'scoped memory for tpu_custom_call.1']
    %17 = vsyncpa [#allocation3], 0
    %18 = vsyncpa [#allocation6], 0
    %19 = vsyncpa [#allocation11], 0
    %20 = vsyncpa [#allocation4], 0
    %s21 = scalar_lea.sflag [#allocation4], 1
    %22 = vsyncpa %s21, 0
    %23 = vsyncpa [#allocation14], 0
    %s24 = scalar_lea.sflag [#allocation14], 1
    %25 = vsyncpa %s24, 0
    loop: start=0, step=1, limit=10
    $region2: #{tpu_custom_call.1} parent=1 // loop_pre_header
      _
    $region3: #{tpu_custom_call.1} parent=1 // loop_header
      %s27 = sphi 0, %s31
      %p28 = scmp.ge.s32.totalorder %s27, 10
      %s34 = sphi 0, %s46
      %s35 = sphi 0, %s42
      %s36 = sphi 0, %s34
      %s37 = sphi 0, %s35
      %s38 = sphi 0, %s36
      %s39 = sphi 0, %s37
      %s49 = sphi 0, %s51
      %s52 = sphi 0, %s49
      %s53 = sphi 0, %s52
      %s69 = sphi 0, %s53
      %s75 = sphi 0, %s77
      %s78 = sphi 0, %s75
      %s79 = sphi 0, %s78
      %s95 = sphi 0, %s79
      %s103 = sphi 0, %s105
      %s106 = sphi 0, %s103
      %s107 = sphi 0, %s106
      %s123 = sphi 0, %s107
      %s131 = sphi 0, %s133
      %s134 = sphi 0, %s131
      %s135 = sphi 0, %s134
      %s151 = sphi 0, %s135
      %s157 = sphi 0, %s159
      %s160 = sphi 0, %s157
      %s161 = sphi 0, %s160
      %s177 = sphi 0, %s161
      %s183 = sphi 0, %s185
      %s186 = sphi 0, %s183
      %s187 = sphi 0, %s186
      %s203 = sphi 0, %s187
      %s207 = sphi 0, %s207
      %s209 = sphi 0, %s207
      %s210 = sphi 0, %s209
      %s224 = sphi 0, %s210
      %s228 = sphi 0, %s228
      %s230 = sphi 0, %s228
      %s231 = sphi 0, %s230
      %s245 = sphi 0, %s231
      %s251 = sphi 0, %s253
      %s254 = sphi 0, %s251
      %s255 = sphi 0, %s254
      %s271 = sphi 0, %s255
      %s277 = sphi 0, %s279
      %s280 = sphi 0, %s277
      %s281 = sphi 0, %s280
      %s297 = sphi 0, %s281
      %s301 = sphi 0, %s301
      %s303 = sphi 0, %s301
      %s304 = sphi 0, %s303
      %s318 = sphi 0, %s304
      %s322 = sphi 0, %s322
      %s324 = sphi 0, %s322
      %s325 = sphi 0, %s324
      %s339 = sphi 0, %s325
    $region4: #{tpu_custom_call.1} parent=1 // loop_header_branch
      %30 = sbr.rel (%p28) target = $region8
    $region5: #{tpu_custom_call.1} parent=1 // loop_body
      %s32 = ssub.s32 %s27, 1
      %s33 = ssub.s32 %s27, 2
      %s40 = sadd.s32 1, %s35
      %p41 = scmp.ge.s32.totalorder %s40, 1
      %s42 = scalar_select %p41, 0, %s40
      %s43 = sadd.s32 1, %s34
      %s44 = scalar_select %p41, %s43, %s34
      %p45 = scmp.ge.s32.totalorder %s44, 8
      %s46 = scalar_select %p45, 0, %s44
      %s47 = ssub.s32 %s35, %s42
      %p48 = scmp.eq.s32.totalorder %s47, 0
      %s50 = sadd.s32 %s49, 1
      %s51 = scalar_select %p48, %s49, %s50
      %p54 = pneg %p48
      %p55 = scmp.eq.s32.totalorder %s27, 7
      %p56 = por %p54, %p55
      %p57 = scmp.ne.s32.totalorder %s49, %s52
      %p58 = scmp.eq.s32.totalorder %s27, 0
      %p59 = por %p57, %p58
      %p60 = scmp.ne.s32.totalorder %s49, %s52
      %p61 = scmp.eq.s32.totalorder %s32, 7
      %p62 = por %p60, %p61
      %p63 = scmp.ne.s32.totalorder %s52, %s53
      %p64 = scmp.eq.s32.totalorder %s32, 0
      %p65 = por %p63, %p64
      %p66 = scmp.ne.s32.totalorder %s52, %s53
      %p67 = scmp.eq.s32.totalorder %s33, 7
      %p68 = por %p66, %p67
      %p70 = scmp.ne.s32.totalorder %s53, %s69
      %p71 = scmp.eq.s32.totalorder %s33, 0
      %p72 = por %p70, %p71
      %s73 = ssub.s32 %s35, %s42
      %p74 = scmp.eq.s32.totalorder %s73, 0
      %s76 = sadd.s32 %s75, 1
      %s77 = scalar_select %p74, %s75, %s76
      %p80 = pneg %p74
      %p81 = scmp.eq.s32.totalorder %s27, 7
      %p82 = por %p80, %p81
      %p83 = scmp.ne.s32.totalorder %s75, %s78
      %p84 = scmp.eq.s32.totalorder %s27, 0
      %p85 = por %p83, %p84
      %p86 = scmp.ne.s32.totalorder %s75, %s78
      %p87 = scmp.eq.s32.totalorder %s32, 7
      %p88 = por %p86, %p87
      %p89 = scmp.ne.s32.totalorder %s78, %s79
      %p90 = scmp.eq.s32.totalorder %s32, 0
      %p91 = por %p89, %p90
      %p92 = scmp.ne.s32.totalorder %s78, %s79
      %p93 = scmp.eq.s32.totalorder %s33, 7
      %p94 = por %p92, %p93
      %p96 = scmp.ne.s32.totalorder %s79, %s95
      %p97 = scmp.eq.s32.totalorder %s33, 0
      %p98 = por %p96, %p97
      %s99 = ssub.s32 %s35, %s42
      %s100 = ssub.s32 %s34, %s46
      %s101 = sor.u32 %s99, %s100
      %p102 = scmp.eq.s32.totalorder %s101, 0
      %s104 = sadd.s32 %s103, 1
      %s105 = scalar_select %p102, %s103, %s104
      %p108 = pneg %p102
      %p109 = scmp.eq.s32.totalorder %s27, 7
      %p110 = por %p108, %p109
      %p111 = scmp.ne.s32.totalorder %s103, %s106
      %p112 = scmp.eq.s32.totalorder %s27, 0
      %p113 = por %p111, %p112
      %p114 = scmp.ne.s32.totalorder %s103, %s106
      %p115 = scmp.eq.s32.totalorder %s32, 7
      %p116 = por %p114, %p115
      %p117 = scmp.ne.s32.totalorder %s106, %s107
      %p118 = scmp.eq.s32.totalorder %s32, 0
      %p119 = por %p117, %p118
      %p120 = scmp.ne.s32.totalorder %s106, %s107
      %p121 = scmp.eq.s32.totalorder %s33, 7
      %p122 = por %p120, %p121
      %p124 = scmp.ne.s32.totalorder %s107, %s123
      %p125 = scmp.eq.s32.totalorder %s33, 0
      %p126 = por %p124, %p125
      %s127 = ssub.s32 %s35, %s42
      %s128 = ssub.s32 %s34, %s46
      %s129 = sor.u32 %s127, %s128
      %p130 = scmp.eq.s32.totalorder %s129, 0
      %s132 = sadd.s32 %s131, 1
      %s133 = scalar_select %p130, %s131, %s132
      %p136 = pneg %p130
      %p137 = scmp.eq.s32.totalorder %s27, 7
      %p138 = por %p136, %p137
      %p139 = scmp.ne.s32.totalorder %s131, %s134
      %p140 = scmp.eq.s32.totalorder %s27, 0
      %p141 = por %p139, %p140
      %p142 = scmp.ne.s32.totalorder %s131, %s134
      %p143 = scmp.eq.s32.totalorder %s32, 7
      %p144 = por %p142, %p143
      %p145 = scmp.ne.s32.totalorder %s134, %s135
      %p146 = scmp.eq.s32.totalorder %s32, 0
      %p147 = por %p145, %p146
      %p148 = scmp.ne.s32.totalorder %s134, %s135
      %p149 = scmp.eq.s32.totalorder %s33, 7
      %p150 = por %p148, %p149
      %p152 = scmp.ne.s32.totalorder %s135, %s151
      %p153 = scmp.eq.s32.totalorder %s33, 0
      %p154 = por %p152, %p153
      %s155 = ssub.s32 %s35, %s42
      %p156 = scmp.eq.s32.totalorder %s155, 0
      %s158 = sadd.s32 %s157, 1
      %s159 = scalar_select %p156, %s157, %s158
      %p162 = pneg %p156
      %p163 = scmp.eq.s32.totalorder %s27, 7
      %p164 = por %p162, %p163
      %p165 = scmp.ne.s32.totalorder %s157, %s160
      %p166 = scmp.eq.s32.totalorder %s27, 0
      %p167 = por %p165, %p166
      %p168 = scmp.ne.s32.totalorder %s157, %s160
      %p169 = scmp.eq.s32.totalorder %s32, 7
      %p170 = por %p168, %p169
      %p171 = scmp.ne.s32.totalorder %s160, %s161
      %p172 = scmp.eq.s32.totalorder %s32, 0
      %p173 = por %p171, %p172
      %p174 = scmp.ne.s32.totalorder %s160, %s161
      %p175 = scmp.eq.s32.totalorder %s33, 7
      %p176 = por %p174, %p175
      %p178 = scmp.ne.s32.totalorder %s161, %s177
      %p179 = scmp.eq.s32.totalorder %s33, 0
      %p180 = por %p178, %p179
      %s181 = ssub.s32 %s35, %s42
      %p182 = scmp.eq.s32.totalorder %s181, 0
      %s184 = sadd.s32 %s183, 1
      %s185 = scalar_select %p182, %s183, %s184
      %p188 = pneg %p182
      %p189 = scmp.eq.s32.totalorder %s27, 7
      %p190 = por %p188, %p189
      %p191 = scmp.ne.s32.totalorder %s183, %s186
      %p192 = scmp.eq.s32.totalorder %s27, 0
      %p193 = por %p191, %p192
      %p194 = scmp.ne.s32.totalorder %s183, %s186
      %p195 = scmp.eq.s32.totalorder %s32, 7
      %p196 = por %p194, %p195
      %p197 = scmp.ne.s32.totalorder %s186, %s187
      %p198 = scmp.eq.s32.totalorder %s32, 0
      %p199 = por %p197, %p198
      %p200 = scmp.ne.s32.totalorder %s186, %s187
      %p201 = scmp.eq.s32.totalorder %s33, 7
      %p202 = por %p200, %p201
      %p204 = scmp.ne.s32.totalorder %s187, %s203
      %p205 = scmp.eq.s32.totalorder %s33, 0
      %p206 = por %p204, %p205
      %s208 = sadd.s32 %s207, 1
      %p211 = scmp.eq.s32.totalorder %s27, 7
      %p212 = scmp.ne.s32.totalorder %s207, %s209
      %p213 = scmp.eq.s32.totalorder %s27, 0
      %p214 = por %p212, %p213
      %p215 = scmp.ne.s32.totalorder %s207, %s209
      %p216 = scmp.eq.s32.totalorder %s32, 7
      %p217 = por %p215, %p216
      %p218 = scmp.ne.s32.totalorder %s209, %s210
      %p219 = scmp.eq.s32.totalorder %s32, 0
      %p220 = por %p218, %p219
      %p221 = scmp.ne.s32.totalorder %s209, %s210
      %p222 = scmp.eq.s32.totalorder %s33, 7
      %p223 = por %p221, %p222
      %p225 = scmp.ne.s32.totalorder %s210, %s224
      %p226 = scmp.eq.s32.totalorder %s33, 0
      %p227 = por %p225, %p226
      %s229 = sadd.s32 %s228, 1
      %p232 = scmp.eq.s32.totalorder %s27, 7
      %p233 = scmp.ne.s32.totalorder %s228, %s230
      %p234 = scmp.eq.s32.totalorder %s27, 0
      %p235 = por %p233, %p234
      %p236 = scmp.ne.s32.totalorder %s228, %s230
      %p237 = scmp.eq.s32.totalorder %s32, 7
      %p238 = por %p236, %p237
      %p239 = scmp.ne.s32.totalorder %s230, %s231
      %p240 = scmp.eq.s32.totalorder %s32, 0
      %p241 = por %p239, %p240
      %p242 = scmp.ne.s32.totalorder %s230, %s231
      %p243 = scmp.eq.s32.totalorder %s33, 7
      %p244 = por %p242, %p243
      %p246 = scmp.ne.s32.totalorder %s231, %s245
      %p247 = scmp.eq.s32.totalorder %s33, 0
      %p248 = por %p246, %p247
      %s249 = ssub.s32 %s34, %s46
      %p250 = scmp.eq.s32.totalorder %s249, 0
      %s252 = sadd.s32 %s251, 1
      %s253 = scalar_select %p250, %s251, %s252
      %p256 = pneg %p250
      %p257 = scmp.eq.s32.totalorder %s27, 7
      %p258 = por %p256, %p257
      %p259 = scmp.ne.s32.totalorder %s251, %s254
      %p260 = scmp.eq.s32.totalorder %s27, 0
      %p261 = por %p259, %p260
      %p262 = scmp.ne.s32.totalorder %s251, %s254
      %p263 = scmp.eq.s32.totalorder %s32, 7
      %p264 = por %p262, %p263
      %p265 = scmp.ne.s32.totalorder %s254, %s255
      %p266 = scmp.eq.s32.totalorder %s32, 0
      %p267 = por %p265, %p266
      %p268 = scmp.ne.s32.totalorder %s254, %s255
      %p269 = scmp.eq.s32.totalorder %s33, 7
      %p270 = por %p268, %p269
      %p272 = scmp.ne.s32.totalorder %s255, %s271
      %p273 = scmp.eq.s32.totalorder %s33, 0
      %p274 = por %p272, %p273
      %s275 = ssub.s32 %s34, %s46
      %p276 = scmp.eq.s32.totalorder %s275, 0
      %s278 = sadd.s32 %s277, 1
      %s279 = scalar_select %p276, %s277, %s278
      %p282 = pneg %p276
      %p283 = scmp.eq.s32.totalorder %s27, 7
      %p284 = por %p282, %p283
      %p285 = scmp.ne.s32.totalorder %s277, %s280
      %p286 = scmp.eq.s32.totalorder %s27, 0
      %p287 = por %p285, %p286
      %p288 = scmp.ne.s32.totalorder %s277, %s280
      %p289 = scmp.eq.s32.totalorder %s32, 7
      %p290 = por %p288, %p289
      %p291 = scmp.ne.s32.totalorder %s280, %s281
      %p292 = scmp.eq.s32.totalorder %s32, 0
      %p293 = por %p291, %p292
      %p294 = scmp.ne.s32.totalorder %s280, %s281
      %p295 = scmp.eq.s32.totalorder %s33, 7
      %p296 = por %p294, %p295
      %p298 = scmp.ne.s32.totalorder %s281, %s297
      %p299 = scmp.eq.s32.totalorder %s33, 0
      %p300 = por %p298, %p299
      %s302 = sadd.s32 %s301, 1
      %p305 = scmp.eq.s32.totalorder %s27, 7
      %p306 = scmp.ne.s32.totalorder %s301, %s303
      %p307 = scmp.eq.s32.totalorder %s27, 0
      %p308 = por %p306, %p307
      %p309 = scmp.ne.s32.totalorder %s301, %s303
      %p310 = scmp.eq.s32.totalorder %s32, 7
      %p311 = por %p309, %p310
      %p312 = scmp.ne.s32.totalorder %s303, %s304
      %p313 = scmp.eq.s32.totalorder %s32, 0
      %p314 = por %p312, %p313
      %p315 = scmp.ne.s32.totalorder %s303, %s304
      %p316 = scmp.eq.s32.totalorder %s33, 7
      %p317 = por %p315, %p316
      %p319 = scmp.ne.s32.totalorder %s304, %s318
      %p320 = scmp.eq.s32.totalorder %s33, 0
      %p321 = por %p319, %p320
      %s323 = sadd.s32 %s322, 1
      %p326 = scmp.eq.s32.totalorder %s27, 7
      %p327 = scmp.ne.s32.totalorder %s322, %s324
      %p328 = scmp.eq.s32.totalorder %s27, 0
      %p329 = por %p327, %p328
      %p330 = scmp.ne.s32.totalorder %s322, %s324
      %p331 = scmp.eq.s32.totalorder %s32, 7
      %p332 = por %p330, %p331
      %p333 = scmp.ne.s32.totalorder %s324, %s325
      %p334 = scmp.eq.s32.totalorder %s32, 0
      %p335 = por %p333, %p334
      %p336 = scmp.ne.s32.totalorder %s324, %s325
      %p337 = scmp.eq.s32.totalorder %s33, 7
      %p338 = por %p336, %p337
      %p340 = scmp.ne.s32.totalorder %s325, %s339
      %p341 = scmp.eq.s32.totalorder %s33, 0
      %p342 = por %p340, %p341
      %p343 = scmp.le.s32.totalorder 1, %s27
      %p344 = scmp.lt.s32.totalorder %s27, 9
      %p345 = pnand %p343, %p344
      %p346 = pneg %p345
      // Predicated region
      $region9: #{tpu_custom_call.1} parent=5 // pred_check
        _
      $region10: #{tpu_custom_call.1} parent=5 // pred_check_branch
        %348 = sbr.rel (%p345) target = $region12
      $region11: #{tpu_custom_call.1} parent=5 // pred_region
        %s349 = ssub.s32 %s27, 1
        // Predicated region
        $region13: #{tpu_custom_call.1} parent=11 // pred_check
          %p350 = pneg %p65
        $region14: #{tpu_custom_call.1} parent=11 // pred_check_branch
          %352 = sbr.rel (%p350) target = $region16
        $region15: #{tpu_custom_call.1} parent=11 // pred_region
          %s353 = smul.u32 2, %s37
          %s355 = ssub.s32 1024, 1024
          %356 = vsyncadd [#allocation3], %s355
          %s357 = smul.addr %s353, 128
          %s358 = scalar_lea.hbm %s0, %s357
          %s359 = sshll.u32 [#allocation2], 4
          %s360 = int_to_ptr.vmem [resolvable:$true] %s359
          %365 = dma.hbm_to_vmem [thread:$0]  %s358, 1024, %s360, [#allocation3], 256, 256, 16
        $region16: #{tpu_custom_call.1} parent=11 // pred_fallthru
          _
        // Predicated region
        $region17: #{tpu_custom_call.1} parent=11 // pred_check
          %p366 = pneg %p91
        $region18: #{tpu_custom_call.1} parent=11 // pred_check_branch
          %368 = sbr.rel (%p366) target = $region20
        $region19: #{tpu_custom_call.1} parent=11 // pred_region
          %s369 = smul.u32 2, %s37
          %s371 = ssub.s32 1024, 1024
          %372 = vsyncadd [#allocation6], %s371
          %s373 = smul.addr %s369, 128
          %s374 = scalar_lea.hbm %s1, %s373
          %s375 = sshll.u32 [#allocation5], 4
          %s376 = int_to_ptr.vmem [resolvable:$true] %s375
          %381 = dma.hbm_to_vmem [thread:$0]  %s374, 1024, %s376, [#allocation6], 256, 256, 16
        $region20: #{tpu_custom_call.1} parent=11 // pred_fallthru
          _
        // Predicated region
        $region21: #{tpu_custom_call.1} parent=11 // pred_check
          %p382 = pneg %p173
        $region22: #{tpu_custom_call.1} parent=11 // pred_check_branch
          %384 = sbr.rel (%p382) target = $region24
        $region23: #{tpu_custom_call.1} parent=11 // pred_region
          %s385 = smul.u32 2, %s37
          %s387 = ssub.s32 32, 32
          %388 = vsyncadd [#allocation6], %s387
          %s389 = smul.addr %s385, 16
          %s390 = scalar_lea.hbm %s4, %s389
          %s392 = sshll.u32 [#allocation9], 4
          %s393 = int_to_ptr.vmem [resolvable:$true] %s392
          %395 = dma.hbm_to_vmem [thread:$0]  %s390, 32, %s393, [#allocation6]
        $region24: #{tpu_custom_call.1} parent=11 // pred_fallthru
          _
        // Predicated region
        $region25: #{tpu_custom_call.1} parent=11 // pred_check
          %p396 = pneg %p199
        $region26: #{tpu_custom_call.1} parent=11 // pred_check_branch
          %398 = sbr.rel (%p396) target = $region28
        $region27: #{tpu_custom_call.1} parent=11 // pred_region
          %s399 = smul.u32 2, %s37
          %s401 = ssub.s32 32, 32
          %402 = vsyncadd [#allocation11], %s401
          %s403 = smul.addr %s399, 16
          %s404 = scalar_lea.hbm %s5, %s403
          %s406 = sshll.u32 [#allocation10], 4
          %s407 = int_to_ptr.vmem [resolvable:$true] %s406
          %409 = dma.hbm_to_vmem [thread:$0]  %s404, 32, %s407, [#allocation11]
        $region28: #{tpu_custom_call.1} parent=11 // pred_fallthru
          _
        // Predicated region
        $region29: #{tpu_custom_call.1} parent=11 // pred_check
          %p410 = pneg %p220
        $region30: #{tpu_custom_call.1} parent=11 // pred_check_branch
          %412 = sbr.rel (%p410) target = $region32
        $region31: #{tpu_custom_call.1} parent=11 // pred_region
          _
        $region32: #{tpu_custom_call.1} parent=11 // pred_fallthru
          _
        // Predicated region
        $region33: #{tpu_custom_call.1} parent=11 // pred_check
          %p413 = pneg %p241
        $region34: #{tpu_custom_call.1} parent=11 // pred_check_branch
          %415 = sbr.rel (%p413) target = $region36
        $region35: #{tpu_custom_call.1} parent=11 // pred_region
          _
        $region36: #{tpu_custom_call.1} parent=11 // pred_fallthru
          _
      $region12: #{tpu_custom_call.1} parent=5 // pred_fallthru
        _
      %p416 = scmp.lt.s32.totalorder %s27, 8
      // Predicated region
      $region37: #{tpu_custom_call.1} parent=5 // pred_check
        %p417 = pneg %p416
      $region38: #{tpu_custom_call.1} parent=5 // pred_check_branch
        %419 = sbr.rel (%p417) target = $region40
      $region39: #{tpu_custom_call.1} parent=5 // pred_region
        // Predicated region
        $region41: #{tpu_custom_call.1} parent=39 // pred_check
          %p420 = pneg %p113
        $region42: #{tpu_custom_call.1} parent=39 // pred_check_branch
          %422 = sbr.rel (%p420) target = $region44
        $region43: #{tpu_custom_call.1} parent=39 // pred_region
          %s423 = sand.u32 %s27, 1
          %s424 = scalar_lea.sflag [#allocation3], %s423
          %s425 = sand.u32 %s103, 1
          %s426 = smul.addr %s425, 512
          %s427 = scalar_lea.vmem [#allocation7], %s426
          %s428 = smul.u32 32, %s35
          %s429 = smul.u32 2, %s34
          %s431 = ssub.s32 8192, 8192
          %432 = vsyncadd %s424, %s431
          %s433 = smul.addr %s428, 16
          %s434 = sadd.s32 %s429, %s433
          %s435 = smul.addr %s434, 128
          %s436 = scalar_lea.hbm %s2, %s435
          %s437 = sshll.u32 %s427, 4
          %s438 = int_to_ptr.vmem [resolvable:$true] %s437
          %443 = dma.hbm_to_vmem [thread:$0]  %s436, 8192, %s438, %s424, 2048, 256, 16
        $region44: #{tpu_custom_call.1} parent=39 // pred_fallthru
          _
        // Predicated region
        $region45: #{tpu_custom_call.1} parent=39 // pred_check
          %p444 = pneg %p141
        $region46: #{tpu_custom_call.1} parent=39 // pred_check_branch
          %446 = sbr.rel (%p444) target = $region48
        $region47: #{tpu_custom_call.1} parent=39 // pred_region
          %s447 = sand.u32 %s27, 1
          %s448 = scalar_lea.sflag [#allocation3], %s447
          %s449 = sand.u32 %s131, 1
          %s450 = smul.addr %s449, 512
          %s451 = scalar_lea.vmem [#allocation8], %s450
          %s452 = smul.u32 32, %s35
          %s453 = smul.u32 2, %s34
          %s455 = ssub.s32 8192, 8192
          %456 = vsyncadd %s448, %s455
          %s457 = smul.addr %s452, 16
          %s458 = sadd.s32 %s453, %s457
          %s459 = smul.addr %s458, 128
          %s460 = scalar_lea.hbm %s3, %s459
          %s461 = sshll.u32 %s451, 4
          %s462 = int_to_ptr.vmem [resolvable:$true] %s461
          %467 = dma.hbm_to_vmem [thread:$0]  %s460, 8192, %s462, %s448, 2048, 256, 16
        $region48: #{tpu_custom_call.1} parent=39 // pred_fallthru
          _
      $region40: #{tpu_custom_call.1} parent=5 // pred_fallthru
        _
      %p468 = scmp.le.s32.totalorder 1, %s27
      %p469 = scmp.lt.s32.totalorder %s27, 9
      %p470 = pnand %p468, %p469
      %p471 = pneg %p470
      // Predicated region
      $region49: #{tpu_custom_call.1} parent=5 // pred_check
        _
      $region50: #{tpu_custom_call.1} parent=5 // pred_check_branch
        %473 = sbr.rel (%p470) target = $region52
      $region51: #{tpu_custom_call.1} parent=5 // pred_region
        %s474 = ssub.s32 %s27, 1
        // Predicated region
        $region53: #{tpu_custom_call.1} parent=51 // pred_check
          %p475 = pneg %p65
        $region54: #{tpu_custom_call.1} parent=51 // pred_check_branch
          %477 = sbr.rel (%p475) target = $region56
        $region55: #{tpu_custom_call.1} parent=51 // pred_region
          %478 = dma.done [#allocation3], 1024
        $region56: #{tpu_custom_call.1} parent=51 // pred_fallthru
          _
        // Predicated region
        $region57: #{tpu_custom_call.1} parent=51 // pred_check
          %p479 = pneg %p91
        $region58: #{tpu_custom_call.1} parent=51 // pred_check_branch
          %481 = sbr.rel (%p479) target = $region60
        $region59: #{tpu_custom_call.1} parent=51 // pred_region
          %482 = dma.done [#allocation6], 1024
        $region60: #{tpu_custom_call.1} parent=51 // pred_fallthru
          _
        %s483 = sand.u32 %s32, 1
        %s484 = scalar_lea.sflag [#allocation3], %s483
        %s485 = sand.u32 %s106, 1
        %s486 = smul.addr %s485, 512
        %s487 = scalar_lea.vmem [#allocation7], %s486
        // Predicated region
        $region61: #{tpu_custom_call.1} parent=51 // pred_check
          %p488 = pneg %p119
        $region62: #{tpu_custom_call.1} parent=51 // pred_check_branch
          %490 = sbr.rel (%p488) target = $region64
        $region63: #{tpu_custom_call.1} parent=51 // pred_region
          %491 = dma.done %s484, 8192
        $region64: #{tpu_custom_call.1} parent=51 // pred_fallthru
          _
        %s492 = sand.u32 %s32, 1
        %s493 = scalar_lea.sflag [#allocation3], %s492
        %s494 = sand.u32 %s134, 1
        %s495 = smul.addr %s494, 512
        %s496 = scalar_lea.vmem [#allocation8], %s495
        // Predicated region
        $region65: #{tpu_custom_call.1} parent=51 // pred_check
          %p497 = pneg %p147
        $region66: #{tpu_custom_call.1} parent=51 // pred_check_branch
          %499 = sbr.rel (%p497) target = $region68
        $region67: #{tpu_custom_call.1} parent=51 // pred_region
          %500 = dma.done %s493, 8192
        $region68: #{tpu_custom_call.1} parent=51 // pred_fallthru
          _
        // Predicated region
        $region69: #{tpu_custom_call.1} parent=51 // pred_check
          %p501 = pneg %p173
        $region70: #{tpu_custom_call.1} parent=51 // pred_check_branch
          %503 = sbr.rel (%p501) target = $region72
        $region71: #{tpu_custom_call.1} parent=51 // pred_region
          %504 = dma.done [#allocation6], 32
        $region72: #{tpu_custom_call.1} parent=51 // pred_fallthru
          _
        // Predicated region
        $region73: #{tpu_custom_call.1} parent=51 // pred_check
          %p505 = pneg %p199
        $region74: #{tpu_custom_call.1} parent=51 // pred_check_branch
          %507 = sbr.rel (%p505) target = $region76
        $region75: #{tpu_custom_call.1} parent=51 // pred_region
          %508 = dma.done [#allocation11], 32
        $region76: #{tpu_custom_call.1} parent=51 // pred_fallthru
          _
        %p509 = pneg %p65
        %p510 = pneg %p62
        %p511 = pneg %p91
        %p512 = pneg %p88
        %s513 = sand.u32 %s32, 1
        %s514 = scalar_lea.sflag [#allocation3], %s513
        %s515 = sand.u32 %s106, 1
        %s516 = smul.addr %s515, 512
        %s517 = scalar_lea.vmem [#allocation7], %s516
        %p518 = pneg %p119
        %p519 = pneg %p116
        %s520 = sand.u32 %s32, 1
        %s521 = scalar_lea.sflag [#allocation3], %s520
        %s522 = sand.u32 %s134, 1
        %s523 = smul.addr %s522, 512
        %s524 = scalar_lea.vmem [#allocation8], %s523
        %p525 = pneg %p147
        %p526 = pneg %p144
        %p527 = pneg %p173
        %p528 = pneg %p170
        %p529 = pneg %p199
        %p530 = pneg %p196
        %p531 = pneg %p220
        %p532 = pneg %p217
        %p533 = pneg %p241
        %p534 = pneg %p238
        %p535 = pneg %p267
        %p536 = pneg %p264
        %s537 = sand.u32 %s254, 1
        %s538 = scalar_lea.sflag [#allocation4], %s537
        %s539 = sand.u32 %s254, 1
        %s540 = smul.addr %s539, 64
        %s541 = scalar_lea.vmem [#allocation12], %s540
        %p542 = pneg %p293
        %p543 = pneg %p290
        %s544 = sand.u32 %s280, 1
        %s545 = scalar_lea.sflag [#allocation14], %s544
        %s546 = sand.u32 %s280, 1
        %s547 = smul.addr %s546, 64
        %s548 = scalar_lea.vmem [#allocation13], %s547
        %p549 = pneg %p314
        %p550 = pneg %p311
        %p551 = pneg %p335
        %p552 = pneg %p332
        %s553 = smul.u32 2, %s37
        %s554 = smul.u32 2, %s37
        %s555 = smul.u32 32, %s37
        %s556 = smul.u32 2, %s36
        %s557 = smul.u32 32, %s37
        %s558 = smul.u32 2, %s36
        %s559 = smul.u32 2, %s37
        %s560 = smul.u32 2, %s37
        %s561 = smul.u32 2, %s36
        %s562 = smul.u32 2, %s36
        %v563 = vld [vmem:[#allocation2] sm:$0xff]
        %v564 = vld [vmem:[#allocation2 + $0x8] sm:$0xff]
        %v565 = vld [vmem:[#allocation2 + $0x10] sm:$0xff]
        %v566 = vld [vmem:[#allocation2 + $0x18] sm:$0xff]
        %v567 = vld [vmem:[#allocation2 + $0x20] sm:$0xff]
        %v568 = vld [vmem:[#allocation2 + $0x28] sm:$0xff]
        %v569 = vld [vmem:[#allocation2 + $0x30] sm:$0xff]
        %v570 = vld [vmem:[#allocation2 + $0x38] sm:$0xff]
        %v571 = vld [vmem:[#allocation5] sm:$0xff]
        %v572 = vld [vmem:[#allocation5 + $0x8] sm:$0xff]
        %v573 = vld [vmem:[#allocation5 + $0x10] sm:$0xff]
        %v574 = vld [vmem:[#allocation5 + $0x18] sm:$0xff]
        %v575 = vld [vmem:[#allocation5 + $0x20] sm:$0xff]
        %v576 = vld [vmem:[#allocation5 + $0x28] sm:$0xff]
        %v577 = vld [vmem:[#allocation5 + $0x30] sm:$0xff]
        %v578 = vld [vmem:[#allocation5 + $0x38] sm:$0xff]
        %v579 = vmax.f32 %v563, 0.0
        %v580 = vmax.f32 %v564, 0.0
        %v581 = vmax.f32 %v565, 0.0
        %v582 = vmax.f32 %v566, 0.0
        %v583 = vmax.f32 %v567, 0.0
        %v584 = vmax.f32 %v568, 0.0
        %v585 = vmax.f32 %v569, 0.0
        %v586 = vmax.f32 %v570, 0.0
        %v587 = vsub.f32 %v563, %v579
        %v588 = vsub.f32 %v564, %v580
        %v589 = vsub.f32 %v565, %v581
        %v590 = vsub.f32 %v566, %v582
        %v591 = vsub.f32 %v567, %v583
        %v592 = vsub.f32 %v568, %v584
        %v593 = vsub.f32 %v569, %v585
        %v594 = vsub.f32 %v570, %v586
        %v595 = vmax.f32 %v571, 0.0
        %v596 = vmax.f32 %v572, 0.0
        %v597 = vmax.f32 %v573, 0.0
        %v598 = vmax.f32 %v574, 0.0
        %v599 = vmax.f32 %v575, 0.0
        %v600 = vmax.f32 %v576, 0.0
        %v601 = vmax.f32 %v577, 0.0
        %v602 = vmax.f32 %v578, 0.0
        %v603 = vsub.f32 %v571, %v595
        %v604 = vsub.f32 %v572, %v596
        %v605 = vsub.f32 %v573, %v597
        %v606 = vsub.f32 %v574, %v598
        %v607 = vsub.f32 %v575, %v599
        %v608 = vsub.f32 %v576, %v600
        %v609 = vsub.f32 %v577, %v601
        %v610 = vsub.f32 %v578, %v602
        %p611 = scmp.eq.s32.totalorder %s37, 0
        // Predicated region
        $region77: #{tpu_custom_call.1} parent=51 // pred_check
          %p612 = pneg %p611
        $region78: #{tpu_custom_call.1} parent=51 // pred_check_branch
          %614 = sbr.rel (%p612) target = $region80
        $region79: #{tpu_custom_call.1} parent=51 // pred_region
          %615 = vst [vmem:[%s541] sm:$0xff] 0.0
          %616 = vst [vmem:[%s541 + $0x8] sm:$0xff] 0.0
          %617 = vst [vmem:[%s541 + $0x10] sm:$0xff] 0.0
          %618 = vst [vmem:[%s541 + $0x18] sm:$0xff] 0.0
          %619 = vst [vmem:[%s541 + $0x20] sm:$0xff] 0.0
          %620 = vst [vmem:[%s541 + $0x28] sm:$0xff] 0.0
          %621 = vst [vmem:[%s541 + $0x30] sm:$0xff] 0.0
          %622 = vst [vmem:[%s541 + $0x38] sm:$0xff] 0.0
          %623 = vst [vmem:[%s548] sm:$0xff] 0.0
          %624 = vst [vmem:[%s548 + $0x8] sm:$0xff] 0.0
          %625 = vst [vmem:[%s548 + $0x10] sm:$0xff] 0.0
          %626 = vst [vmem:[%s548 + $0x18] sm:$0xff] 0.0
          %627 = vst [vmem:[%s548 + $0x20] sm:$0xff] 0.0
          %628 = vst [vmem:[%s548 + $0x28] sm:$0xff] 0.0
          %629 = vst [vmem:[%s548 + $0x30] sm:$0xff] 0.0
          %630 = vst [vmem:[%s548 + $0x38] sm:$0xff] 0.0
        $region80: #{tpu_custom_call.1} parent=51 // pred_fallthru
          _
        %v631 = vld [vmem:[%s541] sm:$0xff]
        %v632 = vld [vmem:[%s541 + $0x8] sm:$0xff]
        %v633 = vld [vmem:[%s541 + $0x10] sm:$0xff]
        %v634 = vld [vmem:[%s541 + $0x18] sm:$0xff]
        %v635 = vld [vmem:[%s541 + $0x20] sm:$0xff]
        %v636 = vld [vmem:[%s541 + $0x28] sm:$0xff]
        %v637 = vld [vmem:[%s541 + $0x30] sm:$0xff]
        %v638 = vld [vmem:[%s541 + $0x38] sm:$0xff]
        %v639 = vld [vmem:[%s487] sm:$0xff]
        %v640 = vld [vmem:[%s487 + $0x8] sm:$0xff]
        %v641 = vld [vmem:[%s487 + $0x10] sm:$0xff]
        %v642 = vld [vmem:[%s487 + $0x18] sm:$0xff]
        %v643 = vld [vmem:[%s487 + $0x20] sm:$0xff]
        %v644 = vld [vmem:[%s487 + $0x28] sm:$0xff]
        %v645 = vld [vmem:[%s487 + $0x30] sm:$0xff]
        %v646 = vld [vmem:[%s487 + $0x38] sm:$0xff]
        %v647 = vld [vmem:[%s487 + $0x40] sm:$0xff]
        %v648 = vld [vmem:[%s487 + $0x48] sm:$0xff]
        %v649 = vld [vmem:[%s487 + $0x50] sm:$0xff]
        %v650 = vld [vmem:[%s487 + $0x58] sm:$0xff]
        %v651 = vld [vmem:[%s487 + $0x60] sm:$0xff]
        %v652 = vld [vmem:[%s487 + $0x68] sm:$0xff]
        %v653 = vld [vmem:[%s487 + $0x70] sm:$0xff]
        %v654 = vld [vmem:[%s487 + $0x78] sm:$0xff]
        %v655 = vld [vmem:[%s487 + $0x80] sm:$0xff]
        %v656 = vld [vmem:[%s487 + $0x88] sm:$0xff]
        %v657 = vld [vmem:[%s487 + $0x90] sm:$0xff]
        %v658 = vld [vmem:[%s487 + $0x98] sm:$0xff]
        %v659 = vld [vmem:[%s487 + $0xa0] sm:$0xff]
        %v660 = vld [vmem:[%s487 + $0xa8] sm:$0xff]
        %v661 = vld [vmem:[%s487 + $0xb0] sm:$0xff]
        %v662 = vld [vmem:[%s487 + $0xb8] sm:$0xff]
        %v663 = vld [vmem:[%s487 + $0xc0] sm:$0xff]
        %v664 = vld [vmem:[%s487 + $0xc8] sm:$0xff]
        %v665 = vld [vmem:[%s487 + $0xd0] sm:$0xff]
        %v666 = vld [vmem:[%s487 + $0xd8] sm:$0xff]
        %v667 = vld [vmem:[%s487 + $0xe0] sm:$0xff]
        %v668 = vld [vmem:[%s487 + $0xe8] sm:$0xff]
        %v669 = vld [vmem:[%s487 + $0xf0] sm:$0xff]
        %v670 = vld [vmem:[%s487 + $0xf8] sm:$0xff]
        %v671 = vld [vmem:[%s487 + $0x100] sm:$0xff]
        %v672 = vld [vmem:[%s487 + $0x108] sm:$0xff]
        %v673 = vld [vmem:[%s487 + $0x110] sm:$0xff]
        %v674 = vld [vmem:[%s487 + $0x118] sm:$0xff]
        %v675 = vld [vmem:[%s487 + $0x120] sm:$0xff]
        %v676 = vld [vmem:[%s487 + $0x128] sm:$0xff]
        %v677 = vld [vmem:[%s487 + $0x130] sm:$0xff]
        %v678 = vld [vmem:[%s487 + $0x138] sm:$0xff]
        %v679 = vld [vmem:[%s487 + $0x140] sm:$0xff]
        %v680 = vld [vmem:[%s487 + $0x148] sm:$0xff]
        %v681 = vld [vmem:[%s487 + $0x150] sm:$0xff]
        %v682 = vld [vmem:[%s487 + $0x158] sm:$0xff]
        %v683 = vld [vmem:[%s487 + $0x160] sm:$0xff]
        %v684 = vld [vmem:[%s487 + $0x168] sm:$0xff]
        %v685 = vld [vmem:[%s487 + $0x170] sm:$0xff]
        %v686 = vld [vmem:[%s487 + $0x178] sm:$0xff]
        %v687 = vld [vmem:[%s487 + $0x180] sm:$0xff]
        %v688 = vld [vmem:[%s487 + $0x188] sm:$0xff]
        %v689 = vld [vmem:[%s487 + $0x190] sm:$0xff]
        %v690 = vld [vmem:[%s487 + $0x198] sm:$0xff]
        %v691 = vld [vmem:[%s487 + $0x1a0] sm:$0xff]
        %v692 = vld [vmem:[%s487 + $0x1a8] sm:$0xff]
        %v693 = vld [vmem:[%s487 + $0x1b0] sm:$0xff]
        %v694 = vld [vmem:[%s487 + $0x1b8] sm:$0xff]
        %v695 = vld [vmem:[%s487 + $0x1c0] sm:$0xff]
        %v696 = vld [vmem:[%s487 + $0x1c8] sm:$0xff]
        %v697 = vld [vmem:[%s487 + $0x1d0] sm:$0xff]
        %v698 = vld [vmem:[%s487 + $0x1d8] sm:$0xff]
        %v699 = vld [vmem:[%s487 + $0x1e0] sm:$0xff]
        %v700 = vld [vmem:[%s487 + $0x1e8] sm:$0xff]
        %v701 = vld [vmem:[%s487 + $0x1f0] sm:$0xff]
        %v702 = vld [vmem:[%s487 + $0x1f8] sm:$0xff]
        %v703 = vld [vmem:[%s496] sm:$0xff]
        %v704 = vld [vmem:[%s496 + $0x8] sm:$0xff]
        %v705 = vld [vmem:[%s496 + $0x10] sm:$0xff]
        %v706 = vld [vmem:[%s496 + $0x18] sm:$0xff]
        %v707 = vld [vmem:[%s496 + $0x20] sm:$0xff]
        %v708 = vld [vmem:[%s496 + $0x28] sm:$0xff]
        %v709 = vld [vmem:[%s496 + $0x30] sm:$0xff]
        %v710 = vld [vmem:[%s496 + $0x38] sm:$0xff]
        %v711 = vld [vmem:[%s496 + $0x40] sm:$0xff]
        %v712 = vld [vmem:[%s496 + $0x48] sm:$0xff]
        %v713 = vld [vmem:[%s496 + $0x50] sm:$0xff]
        %v714 = vld [vmem:[%s496 + $0x58] sm:$0xff]
        %v715 = vld [vmem:[%s496 + $0x60] sm:$0xff]
        %v716 = vld [vmem:[%s496 + $0x68] sm:$0xff]
        %v717 = vld [vmem:[%s496 + $0x70] sm:$0xff]
        %v718 = vld [vmem:[%s496 + $0x78] sm:$0xff]
        %v719 = vld [vmem:[%s496 + $0x80] sm:$0xff]
        %v720 = vld [vmem:[%s496 + $0x88] sm:$0xff]
        %v721 = vld [vmem:[%s496 + $0x90] sm:$0xff]
        %v722 = vld [vmem:[%s496 + $0x98] sm:$0xff]
        %v723 = vld [vmem:[%s496 + $0xa0] sm:$0xff]
        %v724 = vld [vmem:[%s496 + $0xa8] sm:$0xff]
        %v725 = vld [vmem:[%s496 + $0xb0] sm:$0xff]
        %v726 = vld [vmem:[%s496 + $0xb8] sm:$0xff]
        %v727 = vld [vmem:[%s496 + $0xc0] sm:$0xff]
        %v728 = vld [vmem:[%s496 + $0xc8] sm:$0xff]
        %v729 = vld [vmem:[%s496 + $0xd0] sm:$0xff]
        %v730 = vld [vmem:[%s496 + $0xd8] sm:$0xff]
        %v731 = vld [vmem:[%s496 + $0xe0] sm:$0xff]
        %v732 = vld [vmem:[%s496 + $0xe8] sm:$0xff]
        %v733 = vld [vmem:[%s496 + $0xf0] sm:$0xff]
        %v734 = vld [vmem:[%s496 + $0xf8] sm:$0xff]
        %v735 = vld [vmem:[%s496 + $0x100] sm:$0xff]
        %v736 = vld [vmem:[%s496 + $0x108] sm:$0xff]
        %v737 = vld [vmem:[%s496 + $0x110] sm:$0xff]
        %v738 = vld [vmem:[%s496 + $0x118] sm:$0xff]
        %v739 = vld [vmem:[%s496 + $0x120] sm:$0xff]
        %v740 = vld [vmem:[%s496 + $0x128] sm:$0xff]
        %v741 = vld [vmem:[%s496 + $0x130] sm:$0xff]
        %v742 = vld [vmem:[%s496 + $0x138] sm:$0xff]
        %v743 = vld [vmem:[%s496 + $0x140] sm:$0xff]
        %v744 = vld [vmem:[%s496 + $0x148] sm:$0xff]
        %v745 = vld [vmem:[%s496 + $0x150] sm:$0xff]
        %v746 = vld [vmem:[%s496 + $0x158] sm:$0xff]
        %v747 = vld [vmem:[%s496 + $0x160] sm:$0xff]
        %v748 = vld [vmem:[%s496 + $0x168] sm:$0xff]
        %v749 = vld [vmem:[%s496 + $0x170] sm:$0xff]
        %v750 = vld [vmem:[%s496 + $0x178] sm:$0xff]
        %v751 = vld [vmem:[%s496 + $0x180] sm:$0xff]
        %v752 = vld [vmem:[%s496 + $0x188] sm:$0xff]
        %v753 = vld [vmem:[%s496 + $0x190] sm:$0xff]
        %v754 = vld [vmem:[%s496 + $0x198] sm:$0xff]
        %v755 = vld [vmem:[%s496 + $0x1a0] sm:$0xff]
        %v756 = vld [vmem:[%s496 + $0x1a8] sm:$0xff]
        %v757 = vld [vmem:[%s496 + $0x1b0] sm:$0xff]
        %v758 = vld [vmem:[%s496 + $0x1b8] sm:$0xff]
        %v759 = vld [vmem:[%s496 + $0x1c0] sm:$0xff]
        %v760 = vld [vmem:[%s496 + $0x1c8] sm:$0xff]
        %v761 = vld [vmem:[%s496 + $0x1d0] sm:$0xff]
        %v762 = vld [vmem:[%s496 + $0x1d8] sm:$0xff]
        %v763 = vld [vmem:[%s496 + $0x1e0] sm:$0xff]
        %v764 = vld [vmem:[%s496 + $0x1e8] sm:$0xff]
        %v765 = vld [vmem:[%s496 + $0x1f0] sm:$0xff]
        %v766 = vld [vmem:[%s496 + $0x1f8] sm:$0xff]
        %767 = vmatprep.subr.mxu0 %v734
        %768 = vmatpush1.msra.mxu0 %v733
        %769 = vmatprep.subr.mxu0 %v732
        %770 = vmatpush1.msra.mxu0 %v731
        %771 = vmatprep.subr.mxu0 %v730
        %772 = vmatpush1.msra.mxu0 %v729
        %773 = vmatprep.subr.mxu0 %v728
        %774 = vmatpush1.msra.mxu0 %v727
        %775 = vmatprep.subr.mxu0 %v726
        %776 = vmatpush1.msra.mxu0 %v725
        %777 = vmatprep.subr.mxu0 %v724
        %778 = vmatpush1.msra.mxu0 %v723
        %779 = vmatprep.subr.mxu0 %v722
        %780 = vmatpush1.msra.mxu0 %v721
        %781 = vmatprep.subr.mxu0 %v720
        %782 = vmatpush1.msra.mxu0 %v719
        %783 = vmatprep.subr.mxu0 %v718
        %784 = vmatpush1.msra.mxu0 %v717
        %785 = vmatprep.subr.mxu0 %v716
        %786 = vmatpush1.msra.mxu0 %v715
        %787 = vmatprep.subr.mxu0 %v714
        %788 = vmatpush1.msra.mxu0 %v713
        %789 = vmatprep.subr.mxu0 %v712
        %790 = vmatpush1.msra.mxu0 %v711
        %791 = vmatprep.subr.mxu0 %v710
        %792 = vmatpush1.msra.mxu0 %v709
        %793 = vmatprep.subr.mxu0 %v708
        %794 = vmatpush1.msra.mxu0 %v707
        %795 = vmatprep.subr.mxu0 %v706
        %796 = vmatpush1.msra.mxu0 %v705
        %797 = vmatprep.subr.mxu0 %v704
        %798 = vmatpush1.msra.mxu0 %v703
        %799 = vmatprep.subr.mxu0 %v766
        %800 = vmatpush2.msra.mxu0 %v765
        %801 = vmatprep.subr.mxu0 %v764
        %802 = vmatpush2.msra.mxu0 %v763
        %803 = vmatprep.subr.mxu0 %v762
        %804 = vmatpush2.msra.mxu0 %v761
        %805 = vmatprep.subr.mxu0 %v760
        %806 = vmatpush2.msra.mxu0 %v759
        %807 = vmatprep.subr.mxu0 %v758
        %808 = vmatpush2.msra.mxu0 %v757
        %809 = vmatprep.subr.mxu0 %v756
        %810 = vmatpush2.msra.mxu0 %v755
        %811 = vmatprep.subr.mxu0 %v754
        %812 = vmatpush2.msra.mxu0 %v753
        %813 = vmatprep.subr.mxu0 %v752
        %814 = vmatpush2.msra.mxu0 %v751
        %815 = vmatprep.subr.mxu0 %v750
        %816 = vmatpush2.msra.mxu0 %v749
        %817 = vmatprep.subr.mxu0 %v748
        %818 = vmatpush2.msra.mxu0 %v747
        %819 = vmatprep.subr.mxu0 %v746
        %820 = vmatpush2.msra.mxu0 %v745
        %821 = vmatprep.subr.mxu0 %v744
        %822 = vmatpush2.msra.mxu0 %v743
        %823 = vmatprep.subr.mxu0 %v742
        %824 = vmatpush2.msra.mxu0 %v741
        %825 = vmatprep.subr.mxu0 %v740
        %826 = vmatpush2.msra.mxu0 %v739
        %827 = vmatprep.subr.mxu0 %v738
        %828 = vmatpush2.msra.mxu0 %v737
        %829 = vmatprep.subr.mxu0 %v736
        %830 = vmatpush2.msra.mxu0 %v735
        %831 = vmatprep.mubr.f32.mxu0 %v588
        %832 = vmatmul.mubr.f32.gmra.mxu0 %v587
        %v833 = vpop.f32.mrf.mxu0
        %v834 = vadd.f32 0.0, %v833
        %v835 = vpop.f32.mrf.mxu0
        %v836 = vadd.f32 0.0, %v835
        %837 = vmatprep.mubr.f32.mxu0 %v590
        %838 = vmatmul.mubr.f32.gmra.mxu0 %v589
        %v839 = vpop.f32.mrf.mxu0
        %v840 = vadd.f32 0.0, %v839
        %v841 = vpop.f32.mrf.mxu0
        %v842 = vadd.f32 0.0, %v841
        %843 = vmatprep.mubr.f32.mxu0 %v592
        %844 = vmatmul.mubr.f32.gmra.mxu0 %v591
        %v845 = vpop.f32.mrf.mxu0
        %v846 = vadd.f32 0.0, %v845
        %v847 = vpop.f32.mrf.mxu0
        %v848 = vadd.f32 0.0, %v847
        %849 = vmatprep.mubr.f32.mxu0 %v594
        %850 = vmatmul.mubr.f32.gmra.mxu0 %v593
        %v851 = vpop.f32.mrf.mxu0
        %v852 = vadd.f32 0.0, %v851
        %v853 = vpop.f32.mrf.mxu0
        %v854 = vadd.f32 0.0, %v853
        %855 = vdwg.mxu0
        %856 = vmatprep.subr.mxu0 %v670
        %857 = vmatpush1.msra.mxu0 %v669
        %858 = vmatprep.subr.mxu0 %v668
        %859 = vmatpush1.msra.mxu0 %v667
        %860 = vmatprep.subr.mxu0 %v666
        %861 = vmatpush1.msra.mxu0 %v665
        %862 = vmatprep.subr.mxu0 %v664
        %863 = vmatpush1.msra.mxu0 %v663
        %864 = vmatprep.subr.mxu0 %v662
        %865 = vmatpush1.msra.mxu0 %v661
        %866 = vmatprep.subr.mxu0 %v660
        %867 = vmatpush1.msra.mxu0 %v659
        %868 = vmatprep.subr.mxu0 %v658
        %869 = vmatpush1.msra.mxu0 %v657
        %870 = vmatprep.subr.mxu0 %v656
        %871 = vmatpush1.msra.mxu0 %v655
        %872 = vmatprep.subr.mxu0 %v654
        %873 = vmatpush1.msra.mxu0 %v653
        %874 = vmatprep.subr.mxu0 %v652
        %875 = vmatpush1.msra.mxu0 %v651
        %876 = vmatprep.subr.mxu0 %v650
        %877 = vmatpush1.msra.mxu0 %v649
        %878 = vmatprep.subr.mxu0 %v648
        %879 = vmatpush1.msra.mxu0 %v647
        %880 = vmatprep.subr.mxu0 %v646
        %881 = vmatpush1.msra.mxu0 %v645
        %882 = vmatprep.subr.mxu0 %v644
        %883 = vmatpush1.msra.mxu0 %v643
        %884 = vmatprep.subr.mxu0 %v642
        %885 = vmatpush1.msra.mxu0 %v641
        %886 = vmatprep.subr.mxu0 %v640
        %887 = vmatpush1.msra.mxu0 %v639
        %888 = vmatprep.subr.mxu0 %v702
        %889 = vmatpush2.msra.mxu0 %v701
        %890 = vmatprep.subr.mxu0 %v700
        %891 = vmatpush2.msra.mxu0 %v699
        %892 = vmatprep.subr.mxu0 %v698
        %893 = vmatpush2.msra.mxu0 %v697
        %894 = vmatprep.subr.mxu0 %v696
        %895 = vmatpush2.msra.mxu0 %v695
        %896 = vmatprep.subr.mxu0 %v694
        %897 = vmatpush2.msra.mxu0 %v693
        %898 = vmatprep.subr.mxu0 %v692
        %899 = vmatpush2.msra.mxu0 %v691
        %900 = vmatprep.subr.mxu0 %v690
        %901 = vmatpush2.msra.mxu0 %v689
        %902 = vmatprep.subr.mxu0 %v688
        %903 = vmatpush2.msra.mxu0 %v687
        %904 = vmatprep.subr.mxu0 %v686
        %905 = vmatpush2.msra.mxu0 %v685
        %906 = vmatprep.subr.mxu0 %v684
        %907 = vmatpush2.msra.mxu0 %v683
        %908 = vmatprep.subr.mxu0 %v682
        %909 = vmatpush2.msra.mxu0 %v681
        %910 = vmatprep.subr.mxu0 %v680
        %911 = vmatpush2.msra.mxu0 %v679
        %912 = vmatprep.subr.mxu0 %v678
        %913 = vmatpush2.msra.mxu0 %v677
        %914 = vmatprep.subr.mxu0 %v676
        %915 = vmatpush2.msra.mxu0 %v675
        %916 = vmatprep.subr.mxu0 %v674
        %917 = vmatpush2.msra.mxu0 %v673
        %918 = vmatprep.subr.mxu0 %v672
        %919 = vmatpush2.msra.mxu0 %v671
        %920 = vmatprep.mubr.f32.mxu0 %v580
        %921 = vmatmul.mubr.f32.gmra.mxu0 %v579
        %v922 = vpop.f32.mrf.mxu0
        %v923 = vadd.f32 %v834, %v922
        %v924 = vpop.f32.mrf.mxu0
        %v925 = vadd.f32 %v836, %v924
        %926 = vmatprep.mubr.f32.mxu0 %v582
        %927 = vmatmul.mubr.f32.gmra.mxu0 %v581
        %v928 = vpop.f32.mrf.mxu0
        %v929 = vadd.f32 %v840, %v928
        %v930 = vpop.f32.mrf.mxu0
        %v931 = vadd.f32 %v842, %v930
        %932 = vmatprep.mubr.f32.mxu0 %v584
        %933 = vmatmul.mubr.f32.gmra.mxu0 %v583
        %v934 = vpop.f32.mrf.mxu0
        %v935 = vadd.f32 %v846, %v934
        %v936 = vpop.f32.mrf.mxu0
        %v937 = vadd.f32 %v848, %v936
        %938 = vmatprep.mubr.f32.mxu0 %v586
        %939 = vmatmul.mubr.f32.gmra.mxu0 %v585
        %v940 = vpop.f32.mrf.mxu0
        %v941 = vadd.f32 %v852, %v940
        %v942 = vpop.f32.mrf.mxu0
        %v943 = vadd.f32 %v854, %v942
        %944 = vdwg.mxu0
        %v945 = vadd.f32 %v631, %v923
        %v946 = vadd.f32 %v632, %v925
        %v947 = vadd.f32 %v633, %v929
        %v948 = vadd.f32 %v634, %v931
        %v949 = vadd.f32 %v635, %v935
        %v950 = vadd.f32 %v636, %v937
        %v951 = vadd.f32 %v637, %v941
        %v952 = vadd.f32 %v638, %v943
        %953 = vst [vmem:[%s541] sm:$0xff] %v945
        %954 = vst [vmem:[%s541 + $0x8] sm:$0xff] %v946
        %955 = vst [vmem:[%s541 + $0x10] sm:$0xff] %v947
        %956 = vst [vmem:[%s541 + $0x18] sm:$0xff] %v948
        %957 = vst [vmem:[%s541 + $0x20] sm:$0xff] %v949
        %958 = vst [vmem:[%s541 + $0x28] sm:$0xff] %v950
        %959 = vst [vmem:[%s541 + $0x30] sm:$0xff] %v951
        %960 = vst [vmem:[%s541 + $0x38] sm:$0xff] %v952
        %v961 = vld [vmem:[%s548] sm:$0xff]
        %v962 = vld [vmem:[%s548 + $0x8] sm:$0xff]
        %v963 = vld [vmem:[%s548 + $0x10] sm:$0xff]
        %v964 = vld [vmem:[%s548 + $0x18] sm:$0xff]
        %v965 = vld [vmem:[%s548 + $0x20] sm:$0xff]
        %v966 = vld [vmem:[%s548 + $0x28] sm:$0xff]
        %v967 = vld [vmem:[%s548 + $0x30] sm:$0xff]
        %v968 = vld [vmem:[%s548 + $0x38] sm:$0xff]
        %v969 = vld [vmem:[%s496] sm:$0xff]
        %v970 = vld [vmem:[%s496 + $0x8] sm:$0xff]
        %v971 = vld [vmem:[%s496 + $0x10] sm:$0xff]
        %v972 = vld [vmem:[%s496 + $0x18] sm:$0xff]
        %v973 = vld [vmem:[%s496 + $0x20] sm:$0xff]
        %v974 = vld [vmem:[%s496 + $0x28] sm:$0xff]
        %v975 = vld [vmem:[%s496 + $0x30] sm:$0xff]
        %v976 = vld [vmem:[%s496 + $0x38] sm:$0xff]
        %v977 = vld [vmem:[%s496 + $0x40] sm:$0xff]
        %v978 = vld [vmem:[%s496 + $0x48] sm:$0xff]
        %v979 = vld [vmem:[%s496 + $0x50] sm:$0xff]
        %v980 = vld [vmem:[%s496 + $0x58] sm:$0xff]
        %v981 = vld [vmem:[%s496 + $0x60] sm:$0xff]
        %v982 = vld [vmem:[%s496 + $0x68] sm:$0xff]
        %v983 = vld [vmem:[%s496 + $0x70] sm:$0xff]
        %v984 = vld [vmem:[%s496 + $0x78] sm:$0xff]
        %v985 = vld [vmem:[%s496 + $0x80] sm:$0xff]
        %v986 = vld [vmem:[%s496 + $0x88] sm:$0xff]
        %v987 = vld [vmem:[%s496 + $0x90] sm:$0xff]
        %v988 = vld [vmem:[%s496 + $0x98] sm:$0xff]
        %v989 = vld [vmem:[%s496 + $0xa0] sm:$0xff]
        %v990 = vld [vmem:[%s496 + $0xa8] sm:$0xff]
        %v991 = vld [vmem:[%s496 + $0xb0] sm:$0xff]
        %v992 = vld [vmem:[%s496 + $0xb8] sm:$0xff]
        %v993 = vld [vmem:[%s496 + $0xc0] sm:$0xff]
        %v994 = vld [vmem:[%s496 + $0xc8] sm:$0xff]
        %v995 = vld [vmem:[%s496 + $0xd0] sm:$0xff]
        %v996 = vld [vmem:[%s496 + $0xd8] sm:$0xff]
        %v997 = vld [vmem:[%s496 + $0xe0] sm:$0xff]
        %v998 = vld [vmem:[%s496 + $0xe8] sm:$0xff]
        %v999 = vld [vmem:[%s496 + $0xf0] sm:$0xff]
        %v1000 = vld [vmem:[%s496 + $0xf8] sm:$0xff]
        %v1001 = vld [vmem:[%s496 + $0x100] sm:$0xff]
        %v1002 = vld [vmem:[%s496 + $0x108] sm:$0xff]
        %v1003 = vld [vmem:[%s496 + $0x110] sm:$0xff]
        %v1004 = vld [vmem:[%s496 + $0x118] sm:$0xff]
        %v1005 = vld [vmem:[%s496 + $0x120] sm:$0xff]
        %v1006 = vld [vmem:[%s496 + $0x128] sm:$0xff]
        %v1007 = vld [vmem:[%s496 + $0x130] sm:$0xff]
        %v1008 = vld [vmem:[%s496 + $0x138] sm:$0xff]
        %v1009 = vld [vmem:[%s496 + $0x140] sm:$0xff]
        %v1010 = vld [vmem:[%s496 + $0x148] sm:$0xff]
        %v1011 = vld [vmem:[%s496 + $0x150] sm:$0xff]
        %v1012 = vld [vmem:[%s496 + $0x158] sm:$0xff]
        %v1013 = vld [vmem:[%s496 + $0x160] sm:$0xff]
        %v1014 = vld [vmem:[%s496 + $0x168] sm:$0xff]
        %v1015 = vld [vmem:[%s496 + $0x170] sm:$0xff]
        %v1016 = vld [vmem:[%s496 + $0x178] sm:$0xff]
        %v1017 = vld [vmem:[%s496 + $0x180] sm:$0xff]
        %v1018 = vld [vmem:[%s496 + $0x188] sm:$0xff]
        %v1019 = vld [vmem:[%s496 + $0x190] sm:$0xff]
        %v1020 = vld [vmem:[%s496 + $0x198] sm:$0xff]
        %v1021 = vld [vmem:[%s496 + $0x1a0] sm:$0xff]
        %v1022 = vld [vmem:[%s496 + $0x1a8] sm:$0xff]
        %v1023 = vld [vmem:[%s496 + $0x1b0] sm:$0xff]
        %v1024 = vld [vmem:[%s496 + $0x1b8] sm:$0xff]
        %v1025 = vld [vmem:[%s496 + $0x1c0] sm:$0xff]
        %v1026 = vld [vmem:[%s496 + $0x1c8] sm:$0xff]
        %v1027 = vld [vmem:[%s496 + $0x1d0] sm:$0xff]
        %v1028 = vld [vmem:[%s496 + $0x1d8] sm:$0xff]
        %v1029 = vld [vmem:[%s496 + $0x1e0] sm:$0xff]
        %v1030 = vld [vmem:[%s496 + $0x1e8] sm:$0xff]
        %v1031 = vld [vmem:[%s496 + $0x1f0] sm:$0xff]
        %v1032 = vld [vmem:[%s496 + $0x1f8] sm:$0xff]
        %v1033 = vld [vmem:[%s487] sm:$0xff]
        %v1034 = vld [vmem:[%s487 + $0x8] sm:$0xff]
        %v1035 = vld [vmem:[%s487 + $0x10] sm:$0xff]
        %v1036 = vld [vmem:[%s487 + $0x18] sm:$0xff]
        %v1037 = vld [vmem:[%s487 + $0x20] sm:$0xff]
        %v1038 = vld [vmem:[%s487 + $0x28] sm:$0xff]
        %v1039 = vld [vmem:[%s487 + $0x30] sm:$0xff]
        %v1040 = vld [vmem:[%s487 + $0x38] sm:$0xff]
        %v1041 = vld [vmem:[%s487 + $0x40] sm:$0xff]
        %v1042 = vld [vmem:[%s487 + $0x48] sm:$0xff]
        %v1043 = vld [vmem:[%s487 + $0x50] sm:$0xff]
        %v1044 = vld [vmem:[%s487 + $0x58] sm:$0xff]
        %v1045 = vld [vmem:[%s487 + $0x60] sm:$0xff]
        %v1046 = vld [vmem:[%s487 + $0x68] sm:$0xff]
        %v1047 = vld [vmem:[%s487 + $0x70] sm:$0xff]
        %v1048 = vld [vmem:[%s487 + $0x78] sm:$0xff]
        %v1049 = vld [vmem:[%s487 + $0x80] sm:$0xff]
        %v1050 = vld [vmem:[%s487 + $0x88] sm:$0xff]
        %v1051 = vld [vmem:[%s487 + $0x90] sm:$0xff]
        %v1052 = vld [vmem:[%s487 + $0x98] sm:$0xff]
        %v1053 = vld [vmem:[%s487 + $0xa0] sm:$0xff]
        %v1054 = vld [vmem:[%s487 + $0xa8] sm:$0xff]
        %v1055 = vld [vmem:[%s487 + $0xb0] sm:$0xff]
        %v1056 = vld [vmem:[%s487 + $0xb8] sm:$0xff]
        %v1057 = vld [vmem:[%s487 + $0xc0] sm:$0xff]
        %v1058 = vld [vmem:[%s487 + $0xc8] sm:$0xff]
        %v1059 = vld [vmem:[%s487 + $0xd0] sm:$0xff]
        %v1060 = vld [vmem:[%s487 + $0xd8] sm:$0xff]
        %v1061 = vld [vmem:[%s487 + $0xe0] sm:$0xff]
        %v1062 = vld [vmem:[%s487 + $0xe8] sm:$0xff]
        %v1063 = vld [vmem:[%s487 + $0xf0] sm:$0xff]
        %v1064 = vld [vmem:[%s487 + $0xf8] sm:$0xff]
        %v1065 = vld [vmem:[%s487 + $0x100] sm:$0xff]
        %v1066 = vld [vmem:[%s487 + $0x108] sm:$0xff]
        %v1067 = vld [vmem:[%s487 + $0x110] sm:$0xff]
        %v1068 = vld [vmem:[%s487 + $0x118] sm:$0xff]
        %v1069 = vld [vmem:[%s487 + $0x120] sm:$0xff]
        %v1070 = vld [vmem:[%s487 + $0x128] sm:$0xff]
        %v1071 = vld [vmem:[%s487 + $0x130] sm:$0xff]
        %v1072 = vld [vmem:[%s487 + $0x138] sm:$0xff]
        %v1073 = vld [vmem:[%s487 + $0x140] sm:$0xff]
        %v1074 = vld [vmem:[%s487 + $0x148] sm:$0xff]
        %v1075 = vld [vmem:[%s487 + $0x150] sm:$0xff]
        %v1076 = vld [vmem:[%s487 + $0x158] sm:$0xff]
        %v1077 = vld [vmem:[%s487 + $0x160] sm:$0xff]
        %v1078 = vld [vmem:[%s487 + $0x168] sm:$0xff]
        %v1079 = vld [vmem:[%s487 + $0x170] sm:$0xff]
        %v1080 = vld [vmem:[%s487 + $0x178] sm:$0xff]
        %v1081 = vld [vmem:[%s487 + $0x180] sm:$0xff]
        %v1082 = vld [vmem:[%s487 + $0x188] sm:$0xff]
        %v1083 = vld [vmem:[%s487 + $0x190] sm:$0xff]
        %v1084 = vld [vmem:[%s487 + $0x198] sm:$0xff]
        %v1085 = vld [vmem:[%s487 + $0x1a0] sm:$0xff]
        %v1086 = vld [vmem:[%s487 + $0x1a8] sm:$0xff]
        %v1087 = vld [vmem:[%s487 + $0x1b0] sm:$0xff]
        %v1088 = vld [vmem:[%s487 + $0x1b8] sm:$0xff]
        %v1089 = vld [vmem:[%s487 + $0x1c0] sm:$0xff]
        %v1090 = vld [vmem:[%s487 + $0x1c8] sm:$0xff]
        %v1091 = vld [vmem:[%s487 + $0x1d0] sm:$0xff]
        %v1092 = vld [vmem:[%s487 + $0x1d8] sm:$0xff]
        %v1093 = vld [vmem:[%s487 + $0x1e0] sm:$0xff]
        %v1094 = vld [vmem:[%s487 + $0x1e8] sm:$0xff]
        %v1095 = vld [vmem:[%s487 + $0x1f0] sm:$0xff]
        %v1096 = vld [vmem:[%s487 + $0x1f8] sm:$0xff]
        %1097 = vmatprep.subr.mxu0 %v1064
        %1098 = vmatpush1.msra.mxu0 %v1063
        %1099 = vmatprep.subr.mxu0 %v1062
        %1100 = vmatpush1.msra.mxu0 %v1061
        %1101 = vmatprep.subr.mxu0 %v1060
        %1102 = vmatpush1.msra.mxu0 %v1059
        %1103 = vmatprep.subr.mxu0 %v1058
        %1104 = vmatpush1.msra.mxu0 %v1057
        %1105 = vmatprep.subr.mxu0 %v1056
        %1106 = vmatpush1.msra.mxu0 %v1055
        %1107 = vmatprep.subr.mxu0 %v1054
        %1108 = vmatpush1.msra.mxu0 %v1053
        %1109 = vmatprep.subr.mxu0 %v1052
        %1110 = vmatpush1.msra.mxu0 %v1051
        %1111 = vmatprep.subr.mxu0 %v1050
        %1112 = vmatpush1.msra.mxu0 %v1049
        %1113 = vmatprep.subr.mxu0 %v1048
        %1114 = vmatpush1.msra.mxu0 %v1047
        %1115 = vmatprep.subr.mxu0 %v1046
        %1116 = vmatpush1.msra.mxu0 %v1045
        %1117 = vmatprep.subr.mxu0 %v1044
        %1118 = vmatpush1.msra.mxu0 %v1043
        %1119 = vmatprep.subr.mxu0 %v1042
        %1120 = vmatpush1.msra.mxu0 %v1041
        %1121 = vmatprep.subr.mxu0 %v1040
        %1122 = vmatpush1.msra.mxu0 %v1039
        %1123 = vmatprep.subr.mxu0 %v1038
        %1124 = vmatpush1.msra.mxu0 %v1037
        %1125 = vmatprep.subr.mxu0 %v1036
        %1126 = vmatpush1.msra.mxu0 %v1035
        %1127 = vmatprep.subr.mxu0 %v1034
        %1128 = vmatpush1.msra.mxu0 %v1033
        %1129 = vmatprep.subr.mxu0 %v1096
        %1130 = vmatpush2.msra.mxu0 %v1095
        %1131 = vmatprep.subr.mxu0 %v1094
        %1132 = vmatpush2.msra.mxu0 %v1093
        %1133 = vmatprep.subr.mxu0 %v1092
        %1134 = vmatpush2.msra.mxu0 %v1091
        %1135 = vmatprep.subr.mxu0 %v1090
        %1136 = vmatpush2.msra.mxu0 %v1089
        %1137 = vmatprep.subr.mxu0 %v1088
        %1138 = vmatpush2.msra.mxu0 %v1087
        %1139 = vmatprep.subr.mxu0 %v1086
        %1140 = vmatpush2.msra.mxu0 %v1085
        %1141 = vmatprep.subr.mxu0 %v1084
        %1142 = vmatpush2.msra.mxu0 %v1083
        %1143 = vmatprep.subr.mxu0 %v1082
        %1144 = vmatpush2.msra.mxu0 %v1081
        %1145 = vmatprep.subr.mxu0 %v1080
        %1146 = vmatpush2.msra.mxu0 %v1079
        %1147 = vmatprep.subr.mxu0 %v1078
        %1148 = vmatpush2.msra.mxu0 %v1077
        %1149 = vmatprep.subr.mxu0 %v1076
        %1150 = vmatpush2.msra.mxu0 %v1075
        %1151 = vmatprep.subr.mxu0 %v1074
        %1152 = vmatpush2.msra.mxu0 %v1073
        %1153 = vmatprep.subr.mxu0 %v1072
        %1154 = vmatpush2.msra.mxu0 %v1071
        %1155 = vmatprep.subr.mxu0 %v1070
        %1156 = vmatpush2.msra.mxu0 %v1069
        %1157 = vmatprep.subr.mxu0 %v1068
        %1158 = vmatpush2.msra.mxu0 %v1067
        %1159 = vmatprep.subr.mxu0 %v1066
        %1160 = vmatpush2.msra.mxu0 %v1065
        %1161 = vmatprep.mubr.f32.mxu0 %v604
        %1162 = vmatmul.mubr.f32.gmra.mxu0 %v603
        %v1163 = vpop.f32.mrf.mxu0
        %v1164 = vadd.f32 0.0, %v1163
        %v1165 = vpop.f32.mrf.mxu0
        %v1166 = vadd.f32 0.0, %v1165
        %1167 = vmatprep.mubr.f32.mxu0 %v606
        %1168 = vmatmul.mubr.f32.gmra.mxu0 %v605
        %v1169 = vpop.f32.mrf.mxu0
        %v1170 = vadd.f32 0.0, %v1169
        %v1171 = vpop.f32.mrf.mxu0
        %v1172 = vadd.f32 0.0, %v1171
        %1173 = vmatprep.mubr.f32.mxu0 %v608
        %1174 = vmatmul.mubr.f32.gmra.mxu0 %v607
        %v1175 = vpop.f32.mrf.mxu0
        %v1176 = vadd.f32 0.0, %v1175
        %v1177 = vpop.f32.mrf.mxu0
        %v1178 = vadd.f32 0.0, %v1177
        %1179 = vmatprep.mubr.f32.mxu0 %v610
        %1180 = vmatmul.mubr.f32.gmra.mxu0 %v609
        %v1181 = vpop.f32.mrf.mxu0
        %v1182 = vadd.f32 0.0, %v1181
        %v1183 = vpop.f32.mrf.mxu0
        %v1184 = vadd.f32 0.0, %v1183
        %1185 = vdwg.mxu0
        %1186 = vmatprep.subr.mxu0 %v1000
        %1187 = vmatpush1.msra.mxu0 %v999
        %1188 = vmatprep.subr.mxu0 %v998
        %1189 = vmatpush1.msra.mxu0 %v997
        %1190 = vmatprep.subr.mxu0 %v996
        %1191 = vmatpush1.msra.mxu0 %v995
        %1192 = vmatprep.subr.mxu0 %v994
        %1193 = vmatpush1.msra.mxu0 %v993
        %1194 = vmatprep.subr.mxu0 %v992
        %1195 = vmatpush1.msra.mxu0 %v991
        %1196 = vmatprep.subr.mxu0 %v990
        %1197 = vmatpush1.msra.mxu0 %v989
        %1198 = vmatprep.subr.mxu0 %v988
        %1199 = vmatpush1.msra.mxu0 %v987
        %1200 = vmatprep.subr.mxu0 %v986
        %1201 = vmatpush1.msra.mxu0 %v985
        %1202 = vmatprep.subr.mxu0 %v984
        %1203 = vmatpush1.msra.mxu0 %v983
        %1204 = vmatprep.subr.mxu0 %v982
        %1205 = vmatpush1.msra.mxu0 %v981
        %1206 = vmatprep.subr.mxu0 %v980
        %1207 = vmatpush1.msra.mxu0 %v979
        %1208 = vmatprep.subr.mxu0 %v978
        %1209 = vmatpush1.msra.mxu0 %v977
        %1210 = vmatprep.subr.mxu0 %v976
        %1211 = vmatpush1.msra.mxu0 %v975
        %1212 = vmatprep.subr.mxu0 %v974
        %1213 = vmatpush1.msra.mxu0 %v973
        %1214 = vmatprep.subr.mxu0 %v972
        %1215 = vmatpush1.msra.mxu0 %v971
        %1216 = vmatprep.subr.mxu0 %v970
        %1217 = vmatpush1.msra.mxu0 %v969
        %1218 = vmatprep.subr.mxu0 %v1032
        %1219 = vmatpush2.msra.mxu0 %v1031
        %1220 = vmatprep.subr.mxu0 %v1030
        %1221 = vmatpush2.msra.mxu0 %v1029
        %1222 = vmatprep.subr.mxu0 %v1028
        %1223 = vmatpush2.msra.mxu0 %v1027
        %1224 = vmatprep.subr.mxu0 %v1026
        %1225 = vmatpush2.msra.mxu0 %v1025
        %1226 = vmatprep.subr.mxu0 %v1024
        %1227 = vmatpush2.msra.mxu0 %v1023
        %1228 = vmatprep.subr.mxu0 %v1022
        %1229 = vmatpush2.msra.mxu0 %v1021
        %1230 = vmatprep.subr.mxu0 %v1020
        %1231 = vmatpush2.msra.mxu0 %v1019
        %1232 = vmatprep.subr.mxu0 %v1018
        %1233 = vmatpush2.msra.mxu0 %v1017
        %1234 = vmatprep.subr.mxu0 %v1016
        %1235 = vmatpush2.msra.mxu0 %v1015
        %1236 = vmatprep.subr.mxu0 %v1014
        %1237 = vmatpush2.msra.mxu0 %v1013
        %1238 = vmatprep.subr.mxu0 %v1012
        %1239 = vmatpush2.msra.mxu0 %v1011
        %1240 = vmatprep.subr.mxu0 %v1010
        %1241 = vmatpush2.msra.mxu0 %v1009
        %1242 = vmatprep.subr.mxu0 %v1008
        %1243 = vmatpush2.msra.mxu0 %v1007
        %1244 = vmatprep.subr.mxu0 %v1006
        %1245 = vmatpush2.msra.mxu0 %v1005
        %1246 = vmatprep.subr.mxu0 %v1004
        %1247 = vmatpush2.msra.mxu0 %v1003
        %1248 = vmatprep.subr.mxu0 %v1002
        %1249 = vmatpush2.msra.mxu0 %v1001
        %1250 = vmatprep.mubr.f32.mxu0 %v596
        %1251 = vmatmul.mubr.f32.gmra.mxu0 %v595
        %v1252 = vpop.f32.mrf.mxu0
        %v1253 = vadd.f32 %v1164, %v1252
        %v1254 = vpop.f32.mrf.mxu0
        %v1255 = vadd.f32 %v1166, %v1254
        %1256 = vmatprep.mubr.f32.mxu0 %v598
        %1257 = vmatmul.mubr.f32.gmra.mxu0 %v597
        %v1258 = vpop.f32.mrf.mxu0
        %v1259 = vadd.f32 %v1170, %v1258
        %v1260 = vpop.f32.mrf.mxu0
        %v1261 = vadd.f32 %v1172, %v1260
        %1262 = vmatprep.mubr.f32.mxu0 %v600
        %1263 = vmatmul.mubr.f32.gmra.mxu0 %v599
        %v1264 = vpop.f32.mrf.mxu0
        %v1265 = vadd.f32 %v1176, %v1264
        %v1266 = vpop.f32.mrf.mxu0
        %v1267 = vadd.f32 %v1178, %v1266
        %1268 = vmatprep.mubr.f32.mxu0 %v602
        %1269 = vmatmul.mubr.f32.gmra.mxu0 %v601
        %v1270 = vpop.f32.mrf.mxu0
        %v1271 = vadd.f32 %v1182, %v1270
        %v1272 = vpop.f32.mrf.mxu0
        %v1273 = vadd.f32 %v1184, %v1272
        %1274 = vdwg.mxu0
        %v1275 = vadd.f32 %v961, %v1253
        %v1276 = vadd.f32 %v962, %v1255
        %v1277 = vadd.f32 %v963, %v1259
        %v1278 = vadd.f32 %v964, %v1261
        %v1279 = vadd.f32 %v965, %v1265
        %v1280 = vadd.f32 %v966, %v1267
        %v1281 = vadd.f32 %v967, %v1271
        %v1282 = vadd.f32 %v968, %v1273
        %1283 = vst [vmem:[%s548] sm:$0xff] %v1275
        %1284 = vst [vmem:[%s548 + $0x8] sm:$0xff] %v1276
        %1285 = vst [vmem:[%s548 + $0x10] sm:$0xff] %v1277
        %1286 = vst [vmem:[%s548 + $0x18] sm:$0xff] %v1278
        %1287 = vst [vmem:[%s548 + $0x20] sm:$0xff] %v1279
        %1288 = vst [vmem:[%s548 + $0x28] sm:$0xff] %v1280
        %1289 = vst [vmem:[%s548 + $0x30] sm:$0xff] %v1281
        %1290 = vst [vmem:[%s548 + $0x38] sm:$0xff] %v1282
        %p1291 = scmp.eq.s32.totalorder %s36, 0
        %p1292 = pnand %p1291, %p611
        %p1293 = pneg %p1292
        // Predicated region
        $region81: #{tpu_custom_call.1} parent=51 // pred_check
          _
        $region82: #{tpu_custom_call.1} parent=51 // pred_check_branch
          %1295 = sbr.rel (%p1292) target = $region84
        $region83: #{tpu_custom_call.1} parent=51 // pred_region
          %v1296 = vld [vmem:[%s6] sm:$0xff]
          %v1297 = vld [vmem:[%s6 + $0x8] sm:$0xff]
          %v1298 = vld [vmem:[%s6 + $0x10] sm:$0xff]
          %v1299 = vld [vmem:[%s6 + $0x18] sm:$0xff]
          %vm1300 = vcmask 7168
          %1301 = vst.msk [vmem:[%s10] sm:$0xff] %vm1300, %v1296
          %1302 = vst.msk [vmem:[%s10 + $0x8] sm:$0xff] %vm1300, %v1297
          %1303 = vst.msk [vmem:[%s10 + $0x10] sm:$0xff] %vm1300, %v1298
          %1304 = vst.msk [vmem:[%s10 + $0x18] sm:$0xff] %vm1300, %v1299
          %v1305 = vld [vmem:[%s7] sm:$0xff]
          %v1306 = vld [vmem:[%s7 + $0x8] sm:$0xff]
          %v1307 = vld [vmem:[%s7 + $0x10] sm:$0xff]
          %v1308 = vld [vmem:[%s7 + $0x18] sm:$0xff]
          %1309 = vst.msk [vmem:[%s11] sm:$0xff] %vm1300, %v1305
          %1310 = vst.msk [vmem:[%s11 + $0x8] sm:$0xff] %vm1300, %v1306
          %1311 = vst.msk [vmem:[%s11 + $0x10] sm:$0xff] %vm1300, %v1307
          %1312 = vst.msk [vmem:[%s11 + $0x18] sm:$0xff] %vm1300, %v1308
        $region84: #{tpu_custom_call.1} parent=51 // pred_fallthru
          _
        // Predicated region
        $region85: #{tpu_custom_call.1} parent=51 // pred_check
          %p1313 = pneg %p1291
        $region86: #{tpu_custom_call.1} parent=51 // pred_check_branch
          %1315 = sbr.rel (%p1313) target = $region88
        $region87: #{tpu_custom_call.1} parent=51 // pred_region
          %v1316 = vld [vmem:[#allocation9] sm:$0x3]
          %v1317 = vld [vmem:[#allocation10] sm:$0x3]
          %v1318 = vld [vmem:[%s10] sm:$0xff]
          %v1319 = vld [vmem:[%s10 + $0x8] sm:$0xff]
          %v1320 = vld [vmem:[%s10 + $0x10] sm:$0xff]
          %v1321 = vld [vmem:[%s10 + $0x18] sm:$0xff]
          %v1323 = vlaneseq
          %v1324 = vshrl.u32 %v1323, 7
          %v1325 = vsub.s32 0, %v1324
          %v1326 = vrot.slane %v1316, %v1325
          %v1327 = vlaneseq
          %v1328 = vshrl.u32 %v1327, 7
          %v1329 = vsub.s32 1, %v1328
          %v1330 = vrot.slane %v1316, %v1329
          %v1333 = vmul.f32 %v579, %v1326
          %v1334 = vmul.f32 %v580, %v1330
          %v1335 = vmul.f32 %v581, %v1326
          %v1336 = vmul.f32 %v582, %v1330
          %v1337 = vmul.f32 %v583, %v1326
          %v1338 = vmul.f32 %v584, %v1330
          %v1339 = vmul.f32 %v585, %v1326
          %v1340 = vmul.f32 %v586, %v1330
          %v1342 = vlaneseq
          %v1343 = vshrl.u32 %v1342, 7
          %v1344 = vsub.s32 0, %v1343
          %v1345 = vrot.slane %v1317, %v1344
          %v1346 = vlaneseq
          %v1347 = vshrl.u32 %v1346, 7
          %v1348 = vsub.s32 1, %v1347
          %v1349 = vrot.slane %v1317, %v1348
          %v1352 = vmul.f32 %v587, %v1345
          %v1353 = vmul.f32 %v588, %v1349
          %v1354 = vmul.f32 %v589, %v1345
          %v1355 = vmul.f32 %v590, %v1349
          %v1356 = vmul.f32 %v591, %v1345
          %v1357 = vmul.f32 %v592, %v1349
          %v1358 = vmul.f32 %v593, %v1345
          %v1359 = vmul.f32 %v594, %v1349
          %v1360 = vadd.f32 %v1333, %v1352
          %v1361 = vadd.f32 %v1334, %v1353
          %v1362 = vadd.f32 %v1335, %v1354
          %v1363 = vadd.f32 %v1336, %v1355
          %v1364 = vadd.f32 %v1337, %v1356
          %v1365 = vadd.f32 %v1338, %v1357
          %v1366 = vadd.f32 %v1339, %v1358
          %v1367 = vadd.f32 %v1340, %v1359
          %v1368 = vadd.f32 %v1360, %v1361
          %1369 = vadd.xlane.f32.xlu0 %v1368
          %v1370 = vpop.xlane.xlu0 %1369
          %v1371 = vadd.f32 %v1362, %v1363
          %1372 = vadd.xlane.f32.xlu0 %v1371
          %v1373 = vpop.xlane.xlu0 %1372
          %v1374 = vadd.f32 %v1364, %v1365
          %1375 = vadd.xlane.f32.xlu0 %v1374
          %v1376 = vpop.xlane.xlu0 %1375
          %v1377 = vadd.f32 %v1366, %v1367
          %1378 = vadd.xlane.f32.xlu0 %v1377
          %v1379 = vpop.xlane.xlu0 %1378
          %v1380 = vadd.f32 %v1318, %v1370
          %v1381 = vadd.f32 %v1319, %v1373
          %v1382 = vadd.f32 %v1320, %v1376
          %v1383 = vadd.f32 %v1321, %v1379
          %vm1384 = vcmask 7168
          %1385 = vst.msk [vmem:[%s10] sm:$0xff] %vm1384, %v1380
          %1386 = vst.msk [vmem:[%s10 + $0x8] sm:$0xff] %vm1384, %v1381
          %1387 = vst.msk [vmem:[%s10 + $0x10] sm:$0xff] %vm1384, %v1382
          %1388 = vst.msk [vmem:[%s10 + $0x18] sm:$0xff] %vm1384, %v1383
          %v1389 = vld [vmem:[%s11] sm:$0xff]
          %v1390 = vld [vmem:[%s11 + $0x8] sm:$0xff]
          %v1391 = vld [vmem:[%s11 + $0x10] sm:$0xff]
          %v1392 = vld [vmem:[%s11 + $0x18] sm:$0xff]
          %v1393 = vmul.f32 %v595, %v1345
          %v1394 = vmul.f32 %v596, %v1349
          %v1395 = vmul.f32 %v597, %v1345
          %v1396 = vmul.f32 %v598, %v1349
          %v1397 = vmul.f32 %v599, %v1345
          %v1398 = vmul.f32 %v600, %v1349
          %v1399 = vmul.f32 %v601, %v1345
          %v1400 = vmul.f32 %v602, %v1349
          %v1401 = vmul.f32 %v603, %v1326
          %v1402 = vmul.f32 %v604, %v1330
          %v1403 = vmul.f32 %v605, %v1326
          %v1404 = vmul.f32 %v606, %v1330
          %v1405 = vmul.f32 %v607, %v1326
          %v1406 = vmul.f32 %v608, %v1330
          %v1407 = vmul.f32 %v609, %v1326
          %v1408 = vmul.f32 %v610, %v1330
          %v1409 = vadd.f32 %v1393, %v1401
          %v1410 = vadd.f32 %v1394, %v1402
          %v1411 = vadd.f32 %v1395, %v1403
          %v1412 = vadd.f32 %v1396, %v1404
          %v1413 = vadd.f32 %v1397, %v1405
          %v1414 = vadd.f32 %v1398, %v1406
          %v1415 = vadd.f32 %v1399, %v1407
          %v1416 = vadd.f32 %v1400, %v1408
          %v1417 = vadd.f32 %v1409, %v1410
          %1418 = vadd.xlane.f32.xlu0 %v1417
          %v1419 = vpop.xlane.xlu0 %1418
          %v1420 = vadd.f32 %v1411, %v1412
          %1421 = vadd.xlane.f32.xlu0 %v1420
          %v1422 = vpop.xlane.xlu0 %1421
          %v1423 = vadd.f32 %v1413, %v1414
          %1424 = vadd.xlane.f32.xlu0 %v1423
          %v1425 = vpop.xlane.xlu0 %1424
          %v1426 = vadd.f32 %v1415, %v1416
          %1427 = vadd.xlane.f32.xlu0 %v1426
          %v1428 = vpop.xlane.xlu0 %1427
          %v1429 = vadd.f32 %v1389, %v1419
          %v1430 = vadd.f32 %v1390, %v1422
          %v1431 = vadd.f32 %v1391, %v1425
          %v1432 = vadd.f32 %v1392, %v1428
          %1433 = vst.msk [vmem:[%s11] sm:$0xff] %vm1384, %v1429
          %1434 = vst.msk [vmem:[%s11 + $0x8] sm:$0xff] %vm1384, %v1430
          %1435 = vst.msk [vmem:[%s11 + $0x10] sm:$0xff] %vm1384, %v1431
          %1436 = vst.msk [vmem:[%s11 + $0x18] sm:$0xff] %vm1384, %v1432
        $region88: #{tpu_custom_call.1} parent=51 // pred_fallthru
          _
        %s1437 = sand.u32 %s254, 1
        %s1438 = scalar_lea.sflag [#allocation4], %s1437
        %s1439 = sand.u32 %s254, 1
        %s1440 = smul.addr %s1439, 64
        %s1441 = scalar_lea.vmem [#allocation12], %s1440
        %s1442 = sand.u32 %s280, 1
        %s1443 = scalar_lea.sflag [#allocation14], %s1442
        %s1444 = sand.u32 %s280, 1
        %s1445 = smul.addr %s1444, 64
        %s1446 = scalar_lea.vmem [#allocation13], %s1445
        // Predicated region
        $region89: #{tpu_custom_call.1} parent=51 // pred_check
          %p1447 = pneg %p264
        $region90: #{tpu_custom_call.1} parent=51 // pred_check_branch
          %1449 = sbr.rel (%p1447) target = $region92
        $region91: #{tpu_custom_call.1} parent=51 // pred_region
          %s1450 = smul.u32 2, %s36
          %s1452 = ssub.s32 1024, 1024
          %1453 = vsyncadd %s1438, %s1452
          %s1454 = smul.addr %s1450, 128
          %s1455 = scalar_lea.hbm %s8, %s1454
          %s1456 = sshll.u32 %s1441, 4
          %s1457 = int_to_ptr.vmem [resolvable:$true] %s1456
          %1462 = dma.vmem_to_hbm [thread:$0]  %s1457, 1024, %s1455, %s1438, 256, 2048, 16
        $region92: #{tpu_custom_call.1} parent=51 // pred_fallthru
          _
        // Predicated region
        $region93: #{tpu_custom_call.1} parent=51 // pred_check
          %p1463 = pneg %p290
        $region94: #{tpu_custom_call.1} parent=51 // pred_check_branch
          %1465 = sbr.rel (%p1463) target = $region96
        $region95: #{tpu_custom_call.1} parent=51 // pred_region
          %s1466 = smul.u32 2, %s36
          %s1468 = ssub.s32 1024, 1024
          %1469 = vsyncadd %s1443, %s1468
          %s1470 = smul.addr %s1466, 128
          %s1471 = scalar_lea.hbm %s9, %s1470
          %s1472 = sshll.u32 %s1446, 4
          %s1473 = int_to_ptr.vmem [resolvable:$true] %s1472
          %1478 = dma.vmem_to_hbm [thread:$0]  %s1473, 1024, %s1471, %s1443, 256, 2048, 16
        $region96: #{tpu_custom_call.1} parent=51 // pred_fallthru
          _
        // Predicated region
        $region97: #{tpu_custom_call.1} parent=51 // pred_check
          %p1479 = pneg %p311
        $region98: #{tpu_custom_call.1} parent=51 // pred_check_branch
          %1481 = sbr.rel (%p1479) target = $region100
        $region99: #{tpu_custom_call.1} parent=51 // pred_region
          _
        $region100: #{tpu_custom_call.1} parent=51 // pred_fallthru
          _
        // Predicated region
        $region101: #{tpu_custom_call.1} parent=51 // pred_check
          %p1482 = pneg %p332
        $region102: #{tpu_custom_call.1} parent=51 // pred_check_branch
          %1484 = sbr.rel (%p1482) target = $region104
        $region103: #{tpu_custom_call.1} parent=51 // pred_region
          _
        $region104: #{tpu_custom_call.1} parent=51 // pred_fallthru
          _
        // Predicated region
        $region105: #{tpu_custom_call.1} parent=51 // pred_check
          %p1485 = pneg %p311
        $region106: #{tpu_custom_call.1} parent=51 // pred_check_branch
          %1487 = sbr.rel (%p1485) target = $region108
        $region107: #{tpu_custom_call.1} parent=51 // pred_region
          _
        $region108: #{tpu_custom_call.1} parent=51 // pred_fallthru
          _
        // Predicated region
        $region109: #{tpu_custom_call.1} parent=51 // pred_check
          %p1488 = pneg %p332
        $region110: #{tpu_custom_call.1} parent=51 // pred_check_branch
          %1490 = sbr.rel (%p1488) target = $region112
        $region111: #{tpu_custom_call.1} parent=51 // pred_region
          _
        $region112: #{tpu_custom_call.1} parent=51 // pred_fallthru
          _
      $region52: #{tpu_custom_call.1} parent=5 // pred_fallthru
        _
      %p1491 = scmp.le.s32.totalorder 2, %s27
      // Predicated region
      $region113: #{tpu_custom_call.1} parent=5 // pred_check
        %p1492 = pneg %p1491
      $region114: #{tpu_custom_call.1} parent=5 // pred_check_branch
        %1494 = sbr.rel (%p1492) target = $region116
      $region115: #{tpu_custom_call.1} parent=5 // pred_region
        %s1495 = ssub.s32 %s27, 2
        // Predicated region
        $region117: #{tpu_custom_call.1} parent=115 // pred_check
          %p1496 = pneg %p270
        $region118: #{tpu_custom_call.1} parent=115 // pred_check_branch
          %1498 = sbr.rel (%p1496) target = $region120
        $region119: #{tpu_custom_call.1} parent=115 // pred_region
          %s1499 = sand.u32 %s255, 1
          %s1500 = scalar_lea.sflag [#allocation4], %s1499
          %s1501 = sand.u32 %s255, 1
          %s1502 = smul.addr %s1501, 64
          %s1503 = scalar_lea.vmem [#allocation12], %s1502
          %1504 = dma.done %s1500, 1024
        $region120: #{tpu_custom_call.1} parent=115 // pred_fallthru
          _
        // Predicated region
        $region121: #{tpu_custom_call.1} parent=115 // pred_check
          %p1505 = pneg %p296
        $region122: #{tpu_custom_call.1} parent=115 // pred_check_branch
          %1507 = sbr.rel (%p1505) target = $region124
        $region123: #{tpu_custom_call.1} parent=115 // pred_region
          %s1508 = sand.u32 %s281, 1
          %s1509 = scalar_lea.sflag [#allocation14], %s1508
          %s1510 = sand.u32 %s281, 1
          %s1511 = smul.addr %s1510, 64
          %s1512 = scalar_lea.vmem [#allocation13], %s1511
          %1513 = dma.done %s1509, 1024
        $region124: #{tpu_custom_call.1} parent=115 // pred_fallthru
          _
      $region116: #{tpu_custom_call.1} parent=5 // pred_fallthru
        _
    $region6: #{tpu_custom_call.1} parent=1 // loop_footer
      %s31 = sadd.s32 1, %s27
    $region7: #{tpu_custom_call.1} parent=1 // loop_footer_branch
      %26 = sbr.rel target = $region3
    $region8: #{tpu_custom_call.1} parent=1 // loop_exit
      _
    %1514 = vsyncpa [#allocation3], 1
    %s1515 = scalar_lea.sflag [#allocation3], 1
    %1516 = vsyncpa %s1515, 1
    %1517 = vsyncpa [#allocation6], 1
    %1518 = vsyncpa [#allocation11], 1
    %1519 = vsyncpa [#allocation4], 1
    %s1520 = scalar_lea.sflag [#allocation4], 1
    %1521 = vsyncpa %s1520, 1
    %1522 = vsyncpa [#allocation14], 1
    %s1523 = scalar_lea.sflag [#allocation14], 1
    %1524 = vsyncpa %s1523, 1

</llo_original>
